<compile_context>
chip_gen: v6e
topology: v6e:2x2x1
jax: 0.10.0
libtpu: 0.0.40
codegen_flags: <defaults>
</compile_context>

<pallas_src>
import functools

import jax
import jax.numpy as jnp
from jax.experimental import pallas as pl
from jax.experimental.pallas import tpu as pltpu  # noqa: F401  (kept for scratch/params use)

SEQ_LENGTH = 7


# ----------------------------------------------------------------------------
# Fused Pallas kernel: all LSTM layers + final FC in one invocation.
# ----------------------------------------------------------------------------
def _fused_lstm_fc_kernel(*refs, num_layers, seq_len, batch, hidden):
    """refs = (x_ref, [w_ih_t, w_hh_t, bias] * num_layers, w_fc_t, b_fc, out_ref).

    x_ref:    (T*B, F)   time-major flattened input
    w_ih_t:   (F_l, 4H)  input->gates weights (pre-transposed), gates [i,f,g,o]
    w_hh_t:   (H, 4H)    hidden->gates weights (pre-transposed)
    bias:     (1, 4H)    combined bias (b_ih + b_hh)
    w_fc_t:   (T*H, C)   final linear weight (pre-transposed)
    b_fc:     (1, C)
    out_ref:  (B, C)
    """
    x_ref = refs[0]
    layer_refs = refs[1:1 + 3 * num_layers]
    w_fc_ref = refs[1 + 3 * num_layers]
    b_fc_ref = refs[2 + 3 * num_layers]
    out_ref = refs[3 + 3 * num_layers]

    T, B, H = seq_len, batch, hidden
    acts = x_ref[...]  # (T*B, F) f32

    flat = None
    for l in range(num_layers):
        w_ih = layer_refs[3 * l][...]      # (F_l, 4H)
        w_hh = layer_refs[3 * l + 1][...]  # (H, 4H)
        bias = layer_refs[3 * l + 2][...]  # (1, 4H)

        # Hoisted input projection: one batched matmul (M = T*B), off the
        # serial recurrence path.
        gates_x = (
            jnp.dot(acts, w_ih, preferred_element_type=jnp.float32) + bias
        )  # (T*B, 4H)

        h = jnp.zeros((B, H), jnp.float32)
        c = jnp.zeros((B, H), jnp.float32)
        hs = []
        for t in range(T):  # static unroll (T == 7)
            g = gates_x[t * B:(t + 1) * B, :] + jnp.dot(
                h, w_hh, preferred_element_type=jnp.float32
            )  # (B, 4H)
            i_g = jax.nn.sigmoid(g[:, 0 * H:1 * H])
            f_g = jax.nn.sigmoid(g[:, 1 * H:2 * H])
            g_g = jnp.tanh(g[:, 2 * H:3 * H])
            o_g = jax.nn.sigmoid(g[:, 3 * H:4 * H])
            c = f_g * c + i_g * g_g
            h = o_g * jnp.tanh(c)
            hs.append(h)

        if l + 1 < num_layers:
            # Time-major sequence for the next layer's hoisted projection.
            acts = jnp.concatenate(hs, axis=0)        # (T*B, H)
        else:
            # Lane-dense (B, T*H): matches torch output.reshape(B, H*T) exactly.
            flat = jnp.concatenate(hs, axis=1)        # (B, T*H)

    # Fused final linear layer.
    out_ref[...] = (
        jnp.dot(flat, w_fc_ref[...], preferred_element_type=jnp.float32)
        + b_fc_ref[...]
    ).astype(out_ref.dtype)


# ----------------------------------------------------------------------------
# Wrapper
# ----------------------------------------------------------------------------
def lstm_forward(x_btf, params):
    """Full module forward.

    x_btf: (B, T, input_size) batch-first, T == SEQ_LENGTH.
    params: dict with per-layer LSTM weights (pre-transposed) and fc weights.
    Returns (B, num_classes).
    """
    B, T, F = x_btf.shape
    assert T == SEQ_LENGTH
    num_layers = len(params["lstm"])
    H = params["lstm"][0]["w_hh_t"].shape[0]
    C = params["fc"]["w_t"].shape[1]

    # Pad batch to a multiple of 8 (sublane width) for full vreg occupancy.
    B_pad = ((B + 7) // 8) * 8
    if B_pad != B:
        x_btf = jnp.pad(x_btf, ((0, B_pad - B), (0, 0), (0, 0)))

    # Time-major flatten: (T*B_pad, F). Done once in the wrapper.
    x_flat = jnp.transpose(x_btf, (1, 0, 2)).reshape(T * B_pad, F)

    inputs = [x_flat]
    in_specs = [pl.BlockSpec((T * B_pad, F), lambda: (0, 0))]
    for layer in params["lstm"]:
        for name in ("w_ih_t", "w_hh_t", "bias"):
            arr = layer[name]
            inputs.append(arr)
            in_specs.append(pl.BlockSpec(arr.shape, lambda: (0, 0)))
    for name in ("w_t", "bias"):
        arr = params["fc"][name]
        inputs.append(arr)
        in_specs.append(pl.BlockSpec(arr.shape, lambda: (0, 0)))

    kernel = functools.partial(
        _fused_lstm_fc_kernel,
        num_layers=num_layers, seq_len=T, batch=B_pad, hidden=H)

    out = pl.pallas_call(
        kernel,
        out_shape=jax.ShapeDtypeStruct((B_pad, C), x_btf.dtype),
        in_specs=in_specs,
        out_specs=pl.BlockSpec((B_pad, C), lambda: (0, 0)),
    )(*inputs)
    return out[:B]


# ----------------------------------------------------------------------------
# Deterministic parameter init (matches nn.LSTM / nn.Linear shapes)
# ----------------------------------------------------------------------------
def init_params(key, num_classes, input_size, hidden_size, num_layers):
    params = {"lstm": []}
    k = 1.0 / jnp.sqrt(hidden_size)
    for layer in range(num_layers):
        in_f = input_size if layer == 0 else hidden_size
        key, k1, k2, k3, k4 = jax.random.split(key, 5)
        w_ih = jax.random.uniform(k1, (4 * hidden_size, in_f), jnp.float32, -k, k)
        w_hh = jax.random.uniform(k2, (4 * hidden_size, hidden_size), jnp.float32, -k, k)
        b_ih = jax.random.uniform(k3, (4 * hidden_size,), jnp.float32, -k, k)
        b_hh = jax.random.uniform(k4, (4 * hidden_size,), jnp.float32, -k, k)
        params["lstm"].append({
            "w_ih_t": jnp.transpose(w_ih),                 # (in_f, 4H)
            "w_hh_t": jnp.transpose(w_hh),                 # (H, 4H)
            "bias": (b_ih + b_hh).reshape(1, 4 * hidden_size),
        })
    key, k1, k2 = jax.random.split(key, 3)
    d = hidden_size * SEQ_LENGTH
    kf = 1.0 / jnp.sqrt(d)
    w_fc = jax.random.uniform(k1, (num_classes, d), jnp.float32, -kf, kf)
    b_fc = jax.random.uniform(k2, (num_classes,), jnp.float32, -kf, kf)
    params["fc"] = {"w_t": jnp.transpose(w_fc), "bias": b_fc.reshape(1, num_classes)}
    return params


# ----------------------------------------------------------------------------
# Pure-JAX reference (same semantics as torch nn.LSTM + nn.Linear)
# ----------------------------------------------------------------------------
def lstm_forward_ref(x_btf, params):
    B, T, _ = x_btf.shape
    h_seq = x_btf
    for layer in params["lstm"]:
        H = layer["w_hh_t"].shape[0]
        h0 = jnp.zeros((B, H), jnp.float32)
        c0 = jnp.zeros((B, H), jnp.float32)

        def step(carry, x_t, layer=layer, H=H):
            h, c = carry
            gates = x_t @ layer["w_ih_t"] + h @ layer["w_hh_t"] + layer["bias"]
            i = jax.nn.sigmoid(gates[:, 0 * H:1 * H])
            f = jax.nn.sigmoid(gates[:, 1 * H:2 * H])
            g = jnp.tanh(gates[:, 2 * H:3 * H])
            o = jax.nn.sigmoid(gates[:, 3 * H:4 * H])
            c = f * c + i * g
            h = o * jnp.tanh(c)
            return (h, c), h

        _, outs = jax.lax.scan(step, (h0, c0), jnp.transpose(h_seq, (1, 0, 2)))
        h_seq = jnp.transpose(outs, (1, 0, 2))
    flat = h_seq.reshape(B, T * h_seq.shape[-1])
    return flat @ params["fc"]["w_t"] + params["fc"]["bias"]


# ----------------------------------------------------------------------------
if __name__ == "__main__":
    num_classes = 5
    input_size = 16
    hidden_size = 32
    num_layers = 2
    batch = 4

    key = jax.random.PRNGKey(0)
    key, pkey, xkey = jax.random.split(key, 3)
    params = init_params(pkey, num_classes, input_size, hidden_size, num_layers)
    x = jax.random.normal(xkey, (batch, SEQ_LENGTH, input_size), jnp.float32)

    out = lstm_forward(x, params)
    out = jax.block_until_ready(out)

    ref = lstm_forward_ref(x, params)
    assert out.shape == (batch, num_classes)
    assert jnp.allclose(out, ref, atol=1e-4, rtol=1e-4)

    print("KERNEL_OK")
</pallas_src>

<mosaic_0001>
module attributes {stable_mosaic.version = 11 : i64} {
  func.func @_fused_lstm_fc_kernel(%arg0: memref<56x16xf32, #tpu.memory_space<vmem>>, %arg1: memref<16x128xf32, #tpu.memory_space<vmem>>, %arg2: memref<32x128xf32, #tpu.memory_space<vmem>>, %arg3: memref<1x128xf32, #tpu.memory_space<vmem>>, %arg4: memref<32x128xf32, #tpu.memory_space<vmem>>, %arg5: memref<32x128xf32, #tpu.memory_space<vmem>>, %arg6: memref<1x128xf32, #tpu.memory_space<vmem>>, %arg7: memref<224x5xf32, #tpu.memory_space<vmem>>, %arg8: memref<1x5xf32, #tpu.memory_space<vmem>>, %arg9: memref<8x5xf32, #tpu.memory_space<vmem>>) attributes {dimension_semantics = [], scalar_prefetch = 0 : i64, scratch_operands = 0 : i64, tpu.core_type = #tpu.core_type<tc>} {
    %c0 = arith.constant 0 : index
    %c0_0 = arith.constant 0 : index
    %0 = vector.load %arg0[%c0, %c0_0] : memref<56x16xf32, #tpu.memory_space<vmem>>, vector<56x16xf32>
    %c0_1 = arith.constant 0 : index
    %c0_2 = arith.constant 0 : index
    %1 = vector.load %arg1[%c0_1, %c0_2] : memref<16x128xf32, #tpu.memory_space<vmem>>, vector<16x128xf32>
    %c0_3 = arith.constant 0 : index
    %c0_4 = arith.constant 0 : index
    %2 = vector.load %arg2[%c0_3, %c0_4] : memref<32x128xf32, #tpu.memory_space<vmem>>, vector<32x128xf32>
    %c0_5 = arith.constant 0 : index
    %c0_6 = arith.constant 0 : index
    %3 = vector.load %arg3[%c0_5, %c0_6] : memref<1x128xf32, #tpu.memory_space<vmem>>, vector<1x128xf32>
    %cst = arith.constant dense<0.000000e+00> : vector<56x128xf32>
    %4 = tpu.matmul %0, %1, %cst {dimension_numbers = #tpu.dot_dimension_numbers<[1], [0], [0], [1], [0, 0, 1, 1], [], []>} : vector<56x16xf32>, vector<16x128xf32>, vector<56x128xf32> -> vector<56x128xf32>
    %5 = vector.broadcast %3 : vector<1x128xf32> to vector<56x128xf32>
    %6 = arith.addf %4, %5 : vector<56x128xf32>
    %cst_7 = arith.constant 0.000000e+00 : f32
    %7 = vector.broadcast %cst_7 : f32 to vector<8x32xf32>
    %cst_8 = arith.constant 0.000000e+00 : f32
    %8 = vector.broadcast %cst_8 : f32 to vector<8x32xf32>
    %9 = vector.extract_strided_slice %6 {offsets = [0, 0], sizes = [8, 128], strides = [1, 1]} : vector<56x128xf32> to vector<8x128xf32>
    %cst_9 = arith.constant dense<0.000000e+00> : vector<8x128xf32>
    %10 = tpu.matmul %7, %2, %cst_9 {dimension_numbers = #tpu.dot_dimension_numbers<[1], [0], [0], [1], [0, 0, 1, 1], [], []>} : vector<8x32xf32>, vector<32x128xf32>, vector<8x128xf32> -> vector<8x128xf32>
    %11 = arith.addf %9, %10 : vector<8x128xf32>
    %12 = vector.extract_strided_slice %11 {offsets = [0, 0], sizes = [8, 32], strides = [1, 1]} : vector<8x128xf32> to vector<8x32xf32>
    %13 = arith.negf %12 : vector<8x32xf32>
    %14 = math.exp %13 : vector<8x32xf32>
    %cst_10 = arith.constant 1.000000e+00 : f32
    %15 = vector.broadcast %cst_10 : f32 to vector<8x32xf32>
    %16 = arith.addf %15, %14 : vector<8x32xf32>
    %17 = arith.divf %15, %16 : vector<8x32xf32>
    %18 = vector.extract_strided_slice %11 {offsets = [0, 32], sizes = [8, 32], strides = [1, 1]} : vector<8x128xf32> to vector<8x32xf32>
    %19 = arith.negf %18 : vector<8x32xf32>
    %20 = math.exp %19 : vector<8x32xf32>
    %cst_11 = arith.constant 1.000000e+00 : f32
    %21 = vector.broadcast %cst_11 : f32 to vector<8x32xf32>
    %22 = arith.addf %21, %20 : vector<8x32xf32>
    %23 = arith.divf %21, %22 : vector<8x32xf32>
    %24 = vector.extract_strided_slice %11 {offsets = [0, 64], sizes = [8, 32], strides = [1, 1]} : vector<8x128xf32> to vector<8x32xf32>
    %25 = math.tanh %24 : vector<8x32xf32>
    %26 = vector.extract_strided_slice %11 {offsets = [0, 96], sizes = [8, 32], strides = [1, 1]} : vector<8x128xf32> to vector<8x32xf32>
    %27 = arith.negf %26 : vector<8x32xf32>
    %28 = math.exp %27 : vector<8x32xf32>
    %cst_12 = arith.constant 1.000000e+00 : f32
    %29 = vector.broadcast %cst_12 : f32 to vector<8x32xf32>
    %30 = arith.addf %29, %28 : vector<8x32xf32>
    %31 = arith.divf %29, %30 : vector<8x32xf32>
    %32 = arith.mulf %23, %8 : vector<8x32xf32>
    %33 = arith.mulf %17, %25 : vector<8x32xf32>
    %34 = arith.addf %32, %33 : vector<8x32xf32>
    %35 = math.tanh %34 : vector<8x32xf32>
    %36 = arith.mulf %31, %35 : vector<8x32xf32>
    %37 = vector.extract_strided_slice %6 {offsets = [8, 0], sizes = [8, 128], strides = [1, 1]} : vector<56x128xf32> to vector<8x128xf32>
    %cst_13 = arith.constant dense<0.000000e+00> : vector<8x128xf32>
    %38 = tpu.matmul %36, %2, %cst_13 {dimension_numbers = #tpu.dot_dimension_numbers<[1], [0], [0], [1], [0, 0, 1, 1], [], []>} : vector<8x32xf32>, vector<32x128xf32>, vector<8x128xf32> -> vector<8x128xf32>
    %39 = arith.addf %37, %38 : vector<8x128xf32>
    %40 = vector.extract_strided_slice %39 {offsets = [0, 0], sizes = [8, 32], strides = [1, 1]} : vector<8x128xf32> to vector<8x32xf32>
    %41 = arith.negf %40 : vector<8x32xf32>
    %42 = math.exp %41 : vector<8x32xf32>
    %cst_14 = arith.constant 1.000000e+00 : f32
    %43 = vector.broadcast %cst_14 : f32 to vector<8x32xf32>
    %44 = arith.addf %43, %42 : vector<8x32xf32>
    %45 = arith.divf %43, %44 : vector<8x32xf32>
    %46 = vector.extract_strided_slice %39 {offsets = [0, 32], sizes = [8, 32], strides = [1, 1]} : vector<8x128xf32> to vector<8x32xf32>
    %47 = arith.negf %46 : vector<8x32xf32>
    %48 = math.exp %47 : vector<8x32xf32>
    %cst_15 = arith.constant 1.000000e+00 : f32
    %49 = vector.broadcast %cst_15 : f32 to vector<8x32xf32>
    %50 = arith.addf %49, %48 : vector<8x32xf32>
    %51 = arith.divf %49, %50 : vector<8x32xf32>
    %52 = vector.extract_strided_slice %39 {offsets = [0, 64], sizes = [8, 32], strides = [1, 1]} : vector<8x128xf32> to vector<8x32xf32>
    %53 = math.tanh %52 : vector<8x32xf32>
    %54 = vector.extract_strided_slice %39 {offsets = [0, 96], sizes = [8, 32], strides = [1, 1]} : vector<8x128xf32> to vector<8x32xf32>
    %55 = arith.negf %54 : vector<8x32xf32>
    %56 = math.exp %55 : vector<8x32xf32>
    %cst_16 = arith.constant 1.000000e+00 : f32
    %57 = vector.broadcast %cst_16 : f32 to vector<8x32xf32>
    %58 = arith.addf %57, %56 : vector<8x32xf32>
    %59 = arith.divf %57, %58 : vector<8x32xf32>
    %60 = arith.mulf %51, %34 : vector<8x32xf32>
    %61 = arith.mulf %45, %53 : vector<8x32xf32>
    %62 = arith.addf %60, %61 : vector<8x32xf32>
    %63 = math.tanh %62 : vector<8x32xf32>
    %64 = arith.mulf %59, %63 : vector<8x32xf32>
    %65 = vector.extract_strided_slice %6 {offsets = [16, 0], sizes = [8, 128], strides = [1, 1]} : vector<56x128xf32> to vector<8x128xf32>
    %cst_17 = arith.constant dense<0.000000e+00> : vector<8x128xf32>
    %66 = tpu.matmul %64, %2, %cst_17 {dimension_numbers = #tpu.dot_dimension_numbers<[1], [0], [0], [1], [0, 0, 1, 1], [], []>} : vector<8x32xf32>, vector<32x128xf32>, vector<8x128xf32> -> vector<8x128xf32>
    %67 = arith.addf %65, %66 : vector<8x128xf32>
    %68 = vector.extract_strided_slice %67 {offsets = [0, 0], sizes = [8, 32], strides = [1, 1]} : vector<8x128xf32> to vector<8x32xf32>
    %69 = arith.negf %68 : vector<8x32xf32>
    %70 = math.exp %69 : vector<8x32xf32>
    %cst_18 = arith.constant 1.000000e+00 : f32
    %71 = vector.broadcast %cst_18 : f32 to vector<8x32xf32>
    %72 = arith.addf %71, %70 : vector<8x32xf32>
    %73 = arith.divf %71, %72 : vector<8x32xf32>
    %74 = vector.extract_strided_slice %67 {offsets = [0, 32], sizes = [8, 32], strides = [1, 1]} : vector<8x128xf32> to vector<8x32xf32>
    %75 = arith.negf %74 : vector<8x32xf32>
    %76 = math.exp %75 : vector<8x32xf32>
    %cst_19 = arith.constant 1.000000e+00 : f32
    %77 = vector.broadcast %cst_19 : f32 to vector<8x32xf32>
    %78 = arith.addf %77, %76 : vector<8x32xf32>
    %79 = arith.divf %77, %78 : vector<8x32xf32>
    %80 = vector.extract_strided_slice %67 {offsets = [0, 64], sizes = [8, 32], strides = [1, 1]} : vector<8x128xf32> to vector<8x32xf32>
    %81 = math.tanh %80 : vector<8x32xf32>
    %82 = vector.extract_strided_slice %67 {offsets = [0, 96], sizes = [8, 32], strides = [1, 1]} : vector<8x128xf32> to vector<8x32xf32>
    %83 = arith.negf %82 : vector<8x32xf32>
    %84 = math.exp %83 : vector<8x32xf32>
    %cst_20 = arith.constant 1.000000e+00 : f32
    %85 = vector.broadcast %cst_20 : f32 to vector<8x32xf32>
    %86 = arith.addf %85, %84 : vector<8x32xf32>
    %87 = arith.divf %85, %86 : vector<8x32xf32>
    %88 = arith.mulf %79, %62 : vector<8x32xf32>
    %89 = arith.mulf %73, %81 : vector<8x32xf32>
    %90 = arith.addf %88, %89 : vector<8x32xf32>
    %91 = math.tanh %90 : vector<8x32xf32>
    %92 = arith.mulf %87, %91 : vector<8x32xf32>
    %93 = vector.extract_strided_slice %6 {offsets = [24, 0], sizes = [8, 128], strides = [1, 1]} : vector<56x128xf32> to vector<8x128xf32>
    %cst_21 = arith.constant dense<0.000000e+00> : vector<8x128xf32>
    %94 = tpu.matmul %92, %2, %cst_21 {dimension_numbers = #tpu.dot_dimension_numbers<[1], [0], [0], [1], [0, 0, 1, 1], [], []>} : vector<8x32xf32>, vector<32x128xf32>, vector<8x128xf32> -> vector<8x128xf32>
    %95 = arith.addf %93, %94 : vector<8x128xf32>
    %96 = vector.extract_strided_slice %95 {offsets = [0, 0], sizes = [8, 32], strides = [1, 1]} : vector<8x128xf32> to vector<8x32xf32>
    %97 = arith.negf %96 : vector<8x32xf32>
    %98 = math.exp %97 : vector<8x32xf32>
    %cst_22 = arith.constant 1.000000e+00 : f32
    %99 = vector.broadcast %cst_22 : f32 to vector<8x32xf32>
    %100 = arith.addf %99, %98 : vector<8x32xf32>
    %101 = arith.divf %99, %100 : vector<8x32xf32>
    %102 = vector.extract_strided_slice %95 {offsets = [0, 32], sizes = [8, 32], strides = [1, 1]} : vector<8x128xf32> to vector<8x32xf32>
    %103 = arith.negf %102 : vector<8x32xf32>
    %104 = math.exp %103 : vector<8x32xf32>
    %cst_23 = arith.constant 1.000000e+00 : f32
    %105 = vector.broadcast %cst_23 : f32 to vector<8x32xf32>
    %106 = arith.addf %105, %104 : vector<8x32xf32>
    %107 = arith.divf %105, %106 : vector<8x32xf32>
    %108 = vector.extract_strided_slice %95 {offsets = [0, 64], sizes = [8, 32], strides = [1, 1]} : vector<8x128xf32> to vector<8x32xf32>
    %109 = math.tanh %108 : vector<8x32xf32>
    %110 = vector.extract_strided_slice %95 {offsets = [0, 96], sizes = [8, 32], strides = [1, 1]} : vector<8x128xf32> to vector<8x32xf32>
    %111 = arith.negf %110 : vector<8x32xf32>
    %112 = math.exp %111 : vector<8x32xf32>
    %cst_24 = arith.constant 1.000000e+00 : f32
    %113 = vector.broadcast %cst_24 : f32 to vector<8x32xf32>
    %114 = arith.addf %113, %112 : vector<8x32xf32>
    %115 = arith.divf %113, %114 : vector<8x32xf32>
    %116 = arith.mulf %107, %90 : vector<8x32xf32>
    %117 = arith.mulf %101, %109 : vector<8x32xf32>
    %118 = arith.addf %116, %117 : vector<8x32xf32>
    %119 = math.tanh %118 : vector<8x32xf32>
    %120 = arith.mulf %115, %119 : vector<8x32xf32>
    %121 = vector.extract_strided_slice %6 {offsets = [32, 0], sizes = [8, 128], strides = [1, 1]} : vector<56x128xf32> to vector<8x128xf32>
    %cst_25 = arith.constant dense<0.000000e+00> : vector<8x128xf32>
    %122 = tpu.matmul %120, %2, %cst_25 {dimension_numbers = #tpu.dot_dimension_numbers<[1], [0], [0], [1], [0, 0, 1, 1], [], []>} : vector<8x32xf32>, vector<32x128xf32>, vector<8x128xf32> -> vector<8x128xf32>
    %123 = arith.addf %121, %122 : vector<8x128xf32>
    %124 = vector.extract_strided_slice %123 {offsets = [0, 0], sizes = [8, 32], strides = [1, 1]} : vector<8x128xf32> to vector<8x32xf32>
    %125 = arith.negf %124 : vector<8x32xf32>
    %126 = math.exp %125 : vector<8x32xf32>
    %cst_26 = arith.constant 1.000000e+00 : f32
    %127 = vector.broadcast %cst_26 : f32 to vector<8x32xf32>
    %128 = arith.addf %127, %126 : vector<8x32xf32>
    %129 = arith.divf %127, %128 : vector<8x32xf32>
    %130 = vector.extract_strided_slice %123 {offsets = [0, 32], sizes = [8, 32], strides = [1, 1]} : vector<8x128xf32> to vector<8x32xf32>
    %131 = arith.negf %130 : vector<8x32xf32>
    %132 = math.exp %131 : vector<8x32xf32>
    %cst_27 = arith.constant 1.000000e+00 : f32
    %133 = vector.broadcast %cst_27 : f32 to vector<8x32xf32>
    %134 = arith.addf %133, %132 : vector<8x32xf32>
    %135 = arith.divf %133, %134 : vector<8x32xf32>
    %136 = vector.extract_strided_slice %123 {offsets = [0, 64], sizes = [8, 32], strides = [1, 1]} : vector<8x128xf32> to vector<8x32xf32>
    %137 = math.tanh %136 : vector<8x32xf32>
    %138 = vector.extract_strided_slice %123 {offsets = [0, 96], sizes = [8, 32], strides = [1, 1]} : vector<8x128xf32> to vector<8x32xf32>
    %139 = arith.negf %138 : vector<8x32xf32>
    %140 = math.exp %139 : vector<8x32xf32>
    %cst_28 = arith.constant 1.000000e+00 : f32
    %141 = vector.broadcast %cst_28 : f32 to vector<8x32xf32>
    %142 = arith.addf %141, %140 : vector<8x32xf32>
    %143 = arith.divf %141, %142 : vector<8x32xf32>
    %144 = arith.mulf %135, %118 : vector<8x32xf32>
    %145 = arith.mulf %129, %137 : vector<8x32xf32>
    %146 = arith.addf %144, %145 : vector<8x32xf32>
    %147 = math.tanh %146 : vector<8x32xf32>
    %148 = arith.mulf %143, %147 : vector<8x32xf32>
    %149 = vector.extract_strided_slice %6 {offsets = [40, 0], sizes = [8, 128], strides = [1, 1]} : vector<56x128xf32> to vector<8x128xf32>
    %cst_29 = arith.constant dense<0.000000e+00> : vector<8x128xf32>
    %150 = tpu.matmul %148, %2, %cst_29 {dimension_numbers = #tpu.dot_dimension_numbers<[1], [0], [0], [1], [0, 0, 1, 1], [], []>} : vector<8x32xf32>, vector<32x128xf32>, vector<8x128xf32> -> vector<8x128xf32>
    %151 = arith.addf %149, %150 : vector<8x128xf32>
    %152 = vector.extract_strided_slice %151 {offsets = [0, 0], sizes = [8, 32], strides = [1, 1]} : vector<8x128xf32> to vector<8x32xf32>
    %153 = arith.negf %152 : vector<8x32xf32>
    %154 = math.exp %153 : vector<8x32xf32>
    %cst_30 = arith.constant 1.000000e+00 : f32
    %155 = vector.broadcast %cst_30 : f32 to vector<8x32xf32>
    %156 = arith.addf %155, %154 : vector<8x32xf32>
    %157 = arith.divf %155, %156 : vector<8x32xf32>
    %158 = vector.extract_strided_slice %151 {offsets = [0, 32], sizes = [8, 32], strides = [1, 1]} : vector<8x128xf32> to vector<8x32xf32>
    %159 = arith.negf %158 : vector<8x32xf32>
    %160 = math.exp %159 : vector<8x32xf32>
    %cst_31 = arith.constant 1.000000e+00 : f32
    %161 = vector.broadcast %cst_31 : f32 to vector<8x32xf32>
    %162 = arith.addf %161, %160 : vector<8x32xf32>
    %163 = arith.divf %161, %162 : vector<8x32xf32>
    %164 = vector.extract_strided_slice %151 {offsets = [0, 64], sizes = [8, 32], strides = [1, 1]} : vector<8x128xf32> to vector<8x32xf32>
    %165 = math.tanh %164 : vector<8x32xf32>
    %166 = vector.extract_strided_slice %151 {offsets = [0, 96], sizes = [8, 32], strides = [1, 1]} : vector<8x128xf32> to vector<8x32xf32>
    %167 = arith.negf %166 : vector<8x32xf32>
    %168 = math.exp %167 : vector<8x32xf32>
    %cst_32 = arith.constant 1.000000e+00 : f32
    %169 = vector.broadcast %cst_32 : f32 to vector<8x32xf32>
    %170 = arith.addf %169, %168 : vector<8x32xf32>
    %171 = arith.divf %169, %170 : vector<8x32xf32>
    %172 = arith.mulf %163, %146 : vector<8x32xf32>
    %173 = arith.mulf %157, %165 : vector<8x32xf32>
    %174 = arith.addf %172, %173 : vector<8x32xf32>
    %175 = math.tanh %174 : vector<8x32xf32>
    %176 = arith.mulf %171, %175 : vector<8x32xf32>
    %177 = vector.extract_strided_slice %6 {offsets = [48, 0], sizes = [8, 128], strides = [1, 1]} : vector<56x128xf32> to vector<8x128xf32>
    %cst_33 = arith.constant dense<0.000000e+00> : vector<8x128xf32>
    %178 = tpu.matmul %176, %2, %cst_33 {dimension_numbers = #tpu.dot_dimension_numbers<[1], [0], [0], [1], [0, 0, 1, 1], [], []>} : vector<8x32xf32>, vector<32x128xf32>, vector<8x128xf32> -> vector<8x128xf32>
    %179 = arith.addf %177, %178 : vector<8x128xf32>
    %180 = vector.extract_strided_slice %179 {offsets = [0, 0], sizes = [8, 32], strides = [1, 1]} : vector<8x128xf32> to vector<8x32xf32>
    %181 = arith.negf %180 : vector<8x32xf32>
    %182 = math.exp %181 : vector<8x32xf32>
    %cst_34 = arith.constant 1.000000e+00 : f32
    %183 = vector.broadcast %cst_34 : f32 to vector<8x32xf32>
    %184 = arith.addf %183, %182 : vector<8x32xf32>
    %185 = arith.divf %183, %184 : vector<8x32xf32>
    %186 = vector.extract_strided_slice %179 {offsets = [0, 32], sizes = [8, 32], strides = [1, 1]} : vector<8x128xf32> to vector<8x32xf32>
    %187 = arith.negf %186 : vector<8x32xf32>
    %188 = math.exp %187 : vector<8x32xf32>
    %cst_35 = arith.constant 1.000000e+00 : f32
    %189 = vector.broadcast %cst_35 : f32 to vector<8x32xf32>
    %190 = arith.addf %189, %188 : vector<8x32xf32>
    %191 = arith.divf %189, %190 : vector<8x32xf32>
    %192 = vector.extract_strided_slice %179 {offsets = [0, 64], sizes = [8, 32], strides = [1, 1]} : vector<8x128xf32> to vector<8x32xf32>
    %193 = math.tanh %192 : vector<8x32xf32>
    %194 = vector.extract_strided_slice %179 {offsets = [0, 96], sizes = [8, 32], strides = [1, 1]} : vector<8x128xf32> to vector<8x32xf32>
    %195 = arith.negf %194 : vector<8x32xf32>
    %196 = math.exp %195 : vector<8x32xf32>
    %cst_36 = arith.constant 1.000000e+00 : f32
    %197 = vector.broadcast %cst_36 : f32 to vector<8x32xf32>
    %198 = arith.addf %197, %196 : vector<8x32xf32>
    %199 = arith.divf %197, %198 : vector<8x32xf32>
    %200 = arith.mulf %191, %174 : vector<8x32xf32>
    %201 = arith.mulf %185, %193 : vector<8x32xf32>
    %202 = arith.addf %200, %201 : vector<8x32xf32>
    %203 = math.tanh %202 : vector<8x32xf32>
    %204 = arith.mulf %199, %203 : vector<8x32xf32>
    %205 = tpu.concatenate %36, %64, %92, %120, %148, %176, %204 in 0 : vector<8x32xf32>, vector<8x32xf32>, vector<8x32xf32>, vector<8x32xf32>, vector<8x32xf32>, vector<8x32xf32>, vector<8x32xf32> -> vector<56x32xf32>
    %c0_37 = arith.constant 0 : index
    %c0_38 = arith.constant 0 : index
    %206 = vector.load %arg4[%c0_37, %c0_38] : memref<32x128xf32, #tpu.memory_space<vmem>>, vector<32x128xf32>
    %c0_39 = arith.constant 0 : index
    %c0_40 = arith.constant 0 : index
    %207 = vector.load %arg5[%c0_39, %c0_40] : memref<32x128xf32, #tpu.memory_space<vmem>>, vector<32x128xf32>
    %c0_41 = arith.constant 0 : index
    %c0_42 = arith.constant 0 : index
    %208 = vector.load %arg6[%c0_41, %c0_42] : memref<1x128xf32, #tpu.memory_space<vmem>>, vector<1x128xf32>
    %cst_43 = arith.constant dense<0.000000e+00> : vector<56x128xf32>
    %209 = tpu.matmul %205, %206, %cst_43 {dimension_numbers = #tpu.dot_dimension_numbers<[1], [0], [0], [1], [0, 0, 1, 1], [], []>} : vector<56x32xf32>, vector<32x128xf32>, vector<56x128xf32> -> vector<56x128xf32>
    %210 = vector.broadcast %208 : vector<1x128xf32> to vector<56x128xf32>
    %211 = arith.addf %209, %210 : vector<56x128xf32>
    %cst_44 = arith.constant 0.000000e+00 : f32
    %212 = vector.broadcast %cst_44 : f32 to vector<8x32xf32>
    %cst_45 = arith.constant 0.000000e+00 : f32
    %213 = vector.broadcast %cst_45 : f32 to vector<8x32xf32>
    %214 = vector.extract_strided_slice %211 {offsets = [0, 0], sizes = [8, 128], strides = [1, 1]} : vector<56x128xf32> to vector<8x128xf32>
    %cst_46 = arith.constant dense<0.000000e+00> : vector<8x128xf32>
    %215 = tpu.matmul %212, %207, %cst_46 {dimension_numbers = #tpu.dot_dimension_numbers<[1], [0], [0], [1], [0, 0, 1, 1], [], []>} : vector<8x32xf32>, vector<32x128xf32>, vector<8x128xf32> -> vector<8x128xf32>
    %216 = arith.addf %214, %215 : vector<8x128xf32>
    %217 = vector.extract_strided_slice %216 {offsets = [0, 0], sizes = [8, 32], strides = [1, 1]} : vector<8x128xf32> to vector<8x32xf32>
    %218 = arith.negf %217 : vector<8x32xf32>
    %219 = math.exp %218 : vector<8x32xf32>
    %cst_47 = arith.constant 1.000000e+00 : f32
    %220 = vector.broadcast %cst_47 : f32 to vector<8x32xf32>
    %221 = arith.addf %220, %219 : vector<8x32xf32>
    %222 = arith.divf %220, %221 : vector<8x32xf32>
    %223 = vector.extract_strided_slice %216 {offsets = [0, 32], sizes = [8, 32], strides = [1, 1]} : vector<8x128xf32> to vector<8x32xf32>
    %224 = arith.negf %223 : vector<8x32xf32>
    %225 = math.exp %224 : vector<8x32xf32>
    %cst_48 = arith.constant 1.000000e+00 : f32
    %226 = vector.broadcast %cst_48 : f32 to vector<8x32xf32>
    %227 = arith.addf %226, %225 : vector<8x32xf32>
    %228 = arith.divf %226, %227 : vector<8x32xf32>
    %229 = vector.extract_strided_slice %216 {offsets = [0, 64], sizes = [8, 32], strides = [1, 1]} : vector<8x128xf32> to vector<8x32xf32>
    %230 = math.tanh %229 : vector<8x32xf32>
    %231 = vector.extract_strided_slice %216 {offsets = [0, 96], sizes = [8, 32], strides = [1, 1]} : vector<8x128xf32> to vector<8x32xf32>
    %232 = arith.negf %231 : vector<8x32xf32>
    %233 = math.exp %232 : vector<8x32xf32>
    %cst_49 = arith.constant 1.000000e+00 : f32
    %234 = vector.broadcast %cst_49 : f32 to vector<8x32xf32>
    %235 = arith.addf %234, %233 : vector<8x32xf32>
    %236 = arith.divf %234, %235 : vector<8x32xf32>
    %237 = arith.mulf %228, %213 : vector<8x32xf32>
    %238 = arith.mulf %222, %230 : vector<8x32xf32>
    %239 = arith.addf %237, %238 : vector<8x32xf32>
    %240 = math.tanh %239 : vector<8x32xf32>
    %241 = arith.mulf %236, %240 : vector<8x32xf32>
    %242 = vector.extract_strided_slice %211 {offsets = [8, 0], sizes = [8, 128], strides = [1, 1]} : vector<56x128xf32> to vector<8x128xf32>
    %cst_50 = arith.constant dense<0.000000e+00> : vector<8x128xf32>
    %243 = tpu.matmul %241, %207, %cst_50 {dimension_numbers = #tpu.dot_dimension_numbers<[1], [0], [0], [1], [0, 0, 1, 1], [], []>} : vector<8x32xf32>, vector<32x128xf32>, vector<8x128xf32> -> vector<8x128xf32>
    %244 = arith.addf %242, %243 : vector<8x128xf32>
    %245 = vector.extract_strided_slice %244 {offsets = [0, 0], sizes = [8, 32], strides = [1, 1]} : vector<8x128xf32> to vector<8x32xf32>
    %246 = arith.negf %245 : vector<8x32xf32>
    %247 = math.exp %246 : vector<8x32xf32>
    %cst_51 = arith.constant 1.000000e+00 : f32
    %248 = vector.broadcast %cst_51 : f32 to vector<8x32xf32>
    %249 = arith.addf %248, %247 : vector<8x32xf32>
    %250 = arith.divf %248, %249 : vector<8x32xf32>
    %251 = vector.extract_strided_slice %244 {offsets = [0, 32], sizes = [8, 32], strides = [1, 1]} : vector<8x128xf32> to vector<8x32xf32>
    %252 = arith.negf %251 : vector<8x32xf32>
    %253 = math.exp %252 : vector<8x32xf32>
    %cst_52 = arith.constant 1.000000e+00 : f32
    %254 = vector.broadcast %cst_52 : f32 to vector<8x32xf32>
    %255 = arith.addf %254, %253 : vector<8x32xf32>
    %256 = arith.divf %254, %255 : vector<8x32xf32>
    %257 = vector.extract_strided_slice %244 {offsets = [0, 64], sizes = [8, 32], strides = [1, 1]} : vector<8x128xf32> to vector<8x32xf32>
    %258 = math.tanh %257 : vector<8x32xf32>
    %259 = vector.extract_strided_slice %244 {offsets = [0, 96], sizes = [8, 32], strides = [1, 1]} : vector<8x128xf32> to vector<8x32xf32>
    %260 = arith.negf %259 : vector<8x32xf32>
    %261 = math.exp %260 : vector<8x32xf32>
    %cst_53 = arith.constant 1.000000e+00 : f32
    %262 = vector.broadcast %cst_53 : f32 to vector<8x32xf32>
    %263 = arith.addf %262, %261 : vector<8x32xf32>
    %264 = arith.divf %262, %263 : vector<8x32xf32>
    %265 = arith.mulf %256, %239 : vector<8x32xf32>
    %266 = arith.mulf %250, %258 : vector<8x32xf32>
    %267 = arith.addf %265, %266 : vector<8x32xf32>
    %268 = math.tanh %267 : vector<8x32xf32>
    %269 = arith.mulf %264, %268 : vector<8x32xf32>
    %270 = vector.extract_strided_slice %211 {offsets = [16, 0], sizes = [8, 128], strides = [1, 1]} : vector<56x128xf32> to vector<8x128xf32>
    %cst_54 = arith.constant dense<0.000000e+00> : vector<8x128xf32>
    %271 = tpu.matmul %269, %207, %cst_54 {dimension_numbers = #tpu.dot_dimension_numbers<[1], [0], [0], [1], [0, 0, 1, 1], [], []>} : vector<8x32xf32>, vector<32x128xf32>, vector<8x128xf32> -> vector<8x128xf32>
    %272 = arith.addf %270, %271 : vector<8x128xf32>
    %273 = vector.extract_strided_slice %272 {offsets = [0, 0], sizes = [8, 32], strides = [1, 1]} : vector<8x128xf32> to vector<8x32xf32>
    %274 = arith.negf %273 : vector<8x32xf32>
    %275 = math.exp %274 : vector<8x32xf32>
    %cst_55 = arith.constant 1.000000e+00 : f32
    %276 = vector.broadcast %cst_55 : f32 to vector<8x32xf32>
    %277 = arith.addf %276, %275 : vector<8x32xf32>
    %278 = arith.divf %276, %277 : vector<8x32xf32>
    %279 = vector.extract_strided_slice %272 {offsets = [0, 32], sizes = [8, 32], strides = [1, 1]} : vector<8x128xf32> to vector<8x32xf32>
    %280 = arith.negf %279 : vector<8x32xf32>
    %281 = math.exp %280 : vector<8x32xf32>
    %cst_56 = arith.constant 1.000000e+00 : f32
    %282 = vector.broadcast %cst_56 : f32 to vector<8x32xf32>
    %283 = arith.addf %282, %281 : vector<8x32xf32>
    %284 = arith.divf %282, %283 : vector<8x32xf32>
    %285 = vector.extract_strided_slice %272 {offsets = [0, 64], sizes = [8, 32], strides = [1, 1]} : vector<8x128xf32> to vector<8x32xf32>
    %286 = math.tanh %285 : vector<8x32xf32>
    %287 = vector.extract_strided_slice %272 {offsets = [0, 96], sizes = [8, 32], strides = [1, 1]} : vector<8x128xf32> to vector<8x32xf32>
    %288 = arith.negf %287 : vector<8x32xf32>
    %289 = math.exp %288 : vector<8x32xf32>
    %cst_57 = arith.constant 1.000000e+00 : f32
    %290 = vector.broadcast %cst_57 : f32 to vector<8x32xf32>
    %291 = arith.addf %290, %289 : vector<8x32xf32>
    %292 = arith.divf %290, %291 : vector<8x32xf32>
    %293 = arith.mulf %284, %267 : vector<8x32xf32>
    %294 = arith.mulf %278, %286 : vector<8x32xf32>
    %295 = arith.addf %293, %294 : vector<8x32xf32>
    %296 = math.tanh %295 : vector<8x32xf32>
    %297 = arith.mulf %292, %296 : vector<8x32xf32>
    %298 = vector.extract_strided_slice %211 {offsets = [24, 0], sizes = [8, 128], strides = [1, 1]} : vector<56x128xf32> to vector<8x128xf32>
    %cst_58 = arith.constant dense<0.000000e+00> : vector<8x128xf32>
    %299 = tpu.matmul %297, %207, %cst_58 {dimension_numbers = #tpu.dot_dimension_numbers<[1], [0], [0], [1], [0, 0, 1, 1], [], []>} : vector<8x32xf32>, vector<32x128xf32>, vector<8x128xf32> -> vector<8x128xf32>
    %300 = arith.addf %298, %299 : vector<8x128xf32>
    %301 = vector.extract_strided_slice %300 {offsets = [0, 0], sizes = [8, 32], strides = [1, 1]} : vector<8x128xf32> to vector<8x32xf32>
    %302 = arith.negf %301 : vector<8x32xf32>
    %303 = math.exp %302 : vector<8x32xf32>
    %cst_59 = arith.constant 1.000000e+00 : f32
    %304 = vector.broadcast %cst_59 : f32 to vector<8x32xf32>
    %305 = arith.addf %304, %303 : vector<8x32xf32>
    %306 = arith.divf %304, %305 : vector<8x32xf32>
    %307 = vector.extract_strided_slice %300 {offsets = [0, 32], sizes = [8, 32], strides = [1, 1]} : vector<8x128xf32> to vector<8x32xf32>
    %308 = arith.negf %307 : vector<8x32xf32>
    %309 = math.exp %308 : vector<8x32xf32>
    %cst_60 = arith.constant 1.000000e+00 : f32
    %310 = vector.broadcast %cst_60 : f32 to vector<8x32xf32>
    %311 = arith.addf %310, %309 : vector<8x32xf32>
    %312 = arith.divf %310, %311 : vector<8x32xf32>
    %313 = vector.extract_strided_slice %300 {offsets = [0, 64], sizes = [8, 32], strides = [1, 1]} : vector<8x128xf32> to vector<8x32xf32>
    %314 = math.tanh %313 : vector<8x32xf32>
    %315 = vector.extract_strided_slice %300 {offsets = [0, 96], sizes = [8, 32], strides = [1, 1]} : vector<8x128xf32> to vector<8x32xf32>
    %316 = arith.negf %315 : vector<8x32xf32>
    %317 = math.exp %316 : vector<8x32xf32>
    %cst_61 = arith.constant 1.000000e+00 : f32
    %318 = vector.broadcast %cst_61 : f32 to vector<8x32xf32>
    %319 = arith.addf %318, %317 : vector<8x32xf32>
    %320 = arith.divf %318, %319 : vector<8x32xf32>
    %321 = arith.mulf %312, %295 : vector<8x32xf32>
    %322 = arith.mulf %306, %314 : vector<8x32xf32>
    %323 = arith.addf %321, %322 : vector<8x32xf32>
    %324 = math.tanh %323 : vector<8x32xf32>
    %325 = arith.mulf %320, %324 : vector<8x32xf32>
    %326 = vector.extract_strided_slice %211 {offsets = [32, 0], sizes = [8, 128], strides = [1, 1]} : vector<56x128xf32> to vector<8x128xf32>
    %cst_62 = arith.constant dense<0.000000e+00> : vector<8x128xf32>
    %327 = tpu.matmul %325, %207, %cst_62 {dimension_numbers = #tpu.dot_dimension_numbers<[1], [0], [0], [1], [0, 0, 1, 1], [], []>} : vector<8x32xf32>, vector<32x128xf32>, vector<8x128xf32> -> vector<8x128xf32>
    %328 = arith.addf %326, %327 : vector<8x128xf32>
    %329 = vector.extract_strided_slice %328 {offsets = [0, 0], sizes = [8, 32], strides = [1, 1]} : vector<8x128xf32> to vector<8x32xf32>
    %330 = arith.negf %329 : vector<8x32xf32>
    %331 = math.exp %330 : vector<8x32xf32>
    %cst_63 = arith.constant 1.000000e+00 : f32
    %332 = vector.broadcast %cst_63 : f32 to vector<8x32xf32>
    %333 = arith.addf %332, %331 : vector<8x32xf32>
    %334 = arith.divf %332, %333 : vector<8x32xf32>
    %335 = vector.extract_strided_slice %328 {offsets = [0, 32], sizes = [8, 32], strides = [1, 1]} : vector<8x128xf32> to vector<8x32xf32>
    %336 = arith.negf %335 : vector<8x32xf32>
    %337 = math.exp %336 : vector<8x32xf32>
    %cst_64 = arith.constant 1.000000e+00 : f32
    %338 = vector.broadcast %cst_64 : f32 to vector<8x32xf32>
    %339 = arith.addf %338, %337 : vector<8x32xf32>
    %340 = arith.divf %338, %339 : vector<8x32xf32>
    %341 = vector.extract_strided_slice %328 {offsets = [0, 64], sizes = [8, 32], strides = [1, 1]} : vector<8x128xf32> to vector<8x32xf32>
    %342 = math.tanh %341 : vector<8x32xf32>
    %343 = vector.extract_strided_slice %328 {offsets = [0, 96], sizes = [8, 32], strides = [1, 1]} : vector<8x128xf32> to vector<8x32xf32>
    %344 = arith.negf %343 : vector<8x32xf32>
    %345 = math.exp %344 : vector<8x32xf32>
    %cst_65 = arith.constant 1.000000e+00 : f32
    %346 = vector.broadcast %cst_65 : f32 to vector<8x32xf32>
    %347 = arith.addf %346, %345 : vector<8x32xf32>
    %348 = arith.divf %346, %347 : vector<8x32xf32>
    %349 = arith.mulf %340, %323 : vector<8x32xf32>
    %350 = arith.mulf %334, %342 : vector<8x32xf32>
    %351 = arith.addf %349, %350 : vector<8x32xf32>
    %352 = math.tanh %351 : vector<8x32xf32>
    %353 = arith.mulf %348, %352 : vector<8x32xf32>
    %354 = vector.extract_strided_slice %211 {offsets = [40, 0], sizes = [8, 128], strides = [1, 1]} : vector<56x128xf32> to vector<8x128xf32>
    %cst_66 = arith.constant dense<0.000000e+00> : vector<8x128xf32>
    %355 = tpu.matmul %353, %207, %cst_66 {dimension_numbers = #tpu.dot_dimension_numbers<[1], [0], [0], [1], [0, 0, 1, 1], [], []>} : vector<8x32xf32>, vector<32x128xf32>, vector<8x128xf32> -> vector<8x128xf32>
    %356 = arith.addf %354, %355 : vector<8x128xf32>
    %357 = vector.extract_strided_slice %356 {offsets = [0, 0], sizes = [8, 32], strides = [1, 1]} : vector<8x128xf32> to vector<8x32xf32>
    %358 = arith.negf %357 : vector<8x32xf32>
    %359 = math.exp %358 : vector<8x32xf32>
    %cst_67 = arith.constant 1.000000e+00 : f32
    %360 = vector.broadcast %cst_67 : f32 to vector<8x32xf32>
    %361 = arith.addf %360, %359 : vector<8x32xf32>
    %362 = arith.divf %360, %361 : vector<8x32xf32>
    %363 = vector.extract_strided_slice %356 {offsets = [0, 32], sizes = [8, 32], strides = [1, 1]} : vector<8x128xf32> to vector<8x32xf32>
    %364 = arith.negf %363 : vector<8x32xf32>
    %365 = math.exp %364 : vector<8x32xf32>
    %cst_68 = arith.constant 1.000000e+00 : f32
    %366 = vector.broadcast %cst_68 : f32 to vector<8x32xf32>
    %367 = arith.addf %366, %365 : vector<8x32xf32>
    %368 = arith.divf %366, %367 : vector<8x32xf32>
    %369 = vector.extract_strided_slice %356 {offsets = [0, 64], sizes = [8, 32], strides = [1, 1]} : vector<8x128xf32> to vector<8x32xf32>
    %370 = math.tanh %369 : vector<8x32xf32>
    %371 = vector.extract_strided_slice %356 {offsets = [0, 96], sizes = [8, 32], strides = [1, 1]} : vector<8x128xf32> to vector<8x32xf32>
    %372 = arith.negf %371 : vector<8x32xf32>
    %373 = math.exp %372 : vector<8x32xf32>
    %cst_69 = arith.constant 1.000000e+00 : f32
    %374 = vector.broadcast %cst_69 : f32 to vector<8x32xf32>
    %375 = arith.addf %374, %373 : vector<8x32xf32>
    %376 = arith.divf %374, %375 : vector<8x32xf32>
    %377 = arith.mulf %368, %351 : vector<8x32xf32>
    %378 = arith.mulf %362, %370 : vector<8x32xf32>
    %379 = arith.addf %377, %378 : vector<8x32xf32>
    %380 = math.tanh %379 : vector<8x32xf32>
    %381 = arith.mulf %376, %380 : vector<8x32xf32>
    %382 = vector.extract_strided_slice %211 {offsets = [48, 0], sizes = [8, 128], strides = [1, 1]} : vector<56x128xf32> to vector<8x128xf32>
    %cst_70 = arith.constant dense<0.000000e+00> : vector<8x128xf32>
    %383 = tpu.matmul %381, %207, %cst_70 {dimension_numbers = #tpu.dot_dimension_numbers<[1], [0], [0], [1], [0, 0, 1, 1], [], []>} : vector<8x32xf32>, vector<32x128xf32>, vector<8x128xf32> -> vector<8x128xf32>
    %384 = arith.addf %382, %383 : vector<8x128xf32>
    %385 = vector.extract_strided_slice %384 {offsets = [0, 0], sizes = [8, 32], strides = [1, 1]} : vector<8x128xf32> to vector<8x32xf32>
    %386 = arith.negf %385 : vector<8x32xf32>
    %387 = math.exp %386 : vector<8x32xf32>
    %cst_71 = arith.constant 1.000000e+00 : f32
    %388 = vector.broadcast %cst_71 : f32 to vector<8x32xf32>
    %389 = arith.addf %388, %387 : vector<8x32xf32>
    %390 = arith.divf %388, %389 : vector<8x32xf32>
    %391 = vector.extract_strided_slice %384 {offsets = [0, 32], sizes = [8, 32], strides = [1, 1]} : vector<8x128xf32> to vector<8x32xf32>
    %392 = arith.negf %391 : vector<8x32xf32>
    %393 = math.exp %392 : vector<8x32xf32>
    %cst_72 = arith.constant 1.000000e+00 : f32
    %394 = vector.broadcast %cst_72 : f32 to vector<8x32xf32>
    %395 = arith.addf %394, %393 : vector<8x32xf32>
    %396 = arith.divf %394, %395 : vector<8x32xf32>
    %397 = vector.extract_strided_slice %384 {offsets = [0, 64], sizes = [8, 32], strides = [1, 1]} : vector<8x128xf32> to vector<8x32xf32>
    %398 = math.tanh %397 : vector<8x32xf32>
    %399 = vector.extract_strided_slice %384 {offsets = [0, 96], sizes = [8, 32], strides = [1, 1]} : vector<8x128xf32> to vector<8x32xf32>
    %400 = arith.negf %399 : vector<8x32xf32>
    %401 = math.exp %400 : vector<8x32xf32>
    %cst_73 = arith.constant 1.000000e+00 : f32
    %402 = vector.broadcast %cst_73 : f32 to vector<8x32xf32>
    %403 = arith.addf %402, %401 : vector<8x32xf32>
    %404 = arith.divf %402, %403 : vector<8x32xf32>
    %405 = arith.mulf %396, %379 : vector<8x32xf32>
    %406 = arith.mulf %390, %398 : vector<8x32xf32>
    %407 = arith.addf %405, %406 : vector<8x32xf32>
    %408 = math.tanh %407 : vector<8x32xf32>
    %409 = arith.mulf %404, %408 : vector<8x32xf32>
    %410 = tpu.concatenate %241, %269, %297, %325, %353, %381, %409 in 1 : vector<8x32xf32>, vector<8x32xf32>, vector<8x32xf32>, vector<8x32xf32>, vector<8x32xf32>, vector<8x32xf32>, vector<8x32xf32> -> vector<8x224xf32>
    %c0_74 = arith.constant 0 : index
    %c0_75 = arith.constant 0 : index
    %411 = vector.load %arg7[%c0_74, %c0_75] : memref<224x5xf32, #tpu.memory_space<vmem>>, vector<224x5xf32>
    %cst_76 = arith.constant dense<0.000000e+00> : vector<8x5xf32>
    %412 = tpu.matmul %410, %411, %cst_76 {dimension_numbers = #tpu.dot_dimension_numbers<[1], [0], [0], [1], [0, 0, 1, 1], [], []>} : vector<8x224xf32>, vector<224x5xf32>, vector<8x5xf32> -> vector<8x5xf32>
    %c0_77 = arith.constant 0 : index
    %c0_78 = arith.constant 0 : index
    %413 = vector.load %arg8[%c0_77, %c0_78] : memref<1x5xf32, #tpu.memory_space<vmem>>, vector<1x5xf32>
    %414 = vector.broadcast %413 : vector<1x5xf32> to vector<8x5xf32>
    %415 = arith.addf %412, %414 : vector<8x5xf32>
    %c0_79 = arith.constant 0 : index
    %c0_80 = arith.constant 0 : index
    %416 = vector.load %arg9[%c0_79, %c0_80] : memref<8x5xf32, #tpu.memory_space<vmem>>, vector<8x5xf32>
    tpu.vector_store %arg9[%c0_79, %c0_80], %415 {strides = array<i32>} : memref<8x5xf32, #tpu.memory_space<vmem>>, vector<8x5xf32>,
    return
  }
}

</mosaic_0001>

<llo_original>
// kernel: tpu_custom_call.1
$region0: #{tpu_custom_call.1}
  #allocation0 [shape = 'u32[]', space=smem, size = 0x4, offset = 0x4, fixed_abs, tag = 'smem constant byte address 0x4 - core index']
  #allocation1 [shape = 'u32[144,128]{1,0:T(1,128)}', space=vmem, size = 0x12000, scoped, tag = 'internal scratch']
  %s0 = inlined_call_operand.vmem [shape: f32[56,16], index: 0, kind: input, shape index: {}]
  %s1 = inlined_call_operand.vmem [shape: f32[16,128], index: 1, kind: input, shape index: {}]
  %s2 = inlined_call_operand.vmem [shape: f32[32,128], index: 2, kind: input, shape index: {}]
  %s3 = inlined_call_operand.vmem [shape: f32[1,128], index: 3, kind: input, shape index: {}]
  %s4 = inlined_call_operand.vmem [shape: f32[32,128], index: 4, kind: input, shape index: {}]
  %s5 = inlined_call_operand.vmem [shape: f32[32,128], index: 5, kind: input, shape index: {}]
  %s6 = inlined_call_operand.vmem [shape: f32[1,128], index: 6, kind: input, shape index: {}]
  %s7 = inlined_call_operand.vmem [shape: f32[224,5], index: 7, kind: input, shape index: {}]
  %s8 = inlined_call_operand.vmem [shape: f32[1,5], index: 8, kind: input, shape index: {}]
  %s9 = inlined_call_operand.hbm [shape: f32[8,5], index: 9, kind: output, shape index: {}]
  %s10 = sld [smem:[#allocation0]]
  $region46: #{tpu_custom_call.1} parent=0
    _
  %s12 = ssub.s32 1, %s10
  %s13 = scalar_select 0, %s12, %s10
  $region1: #{tpu_custom_call.1} parent=0
    #allocation2 [shape = 'u8[4096]{0}', space=vmem, size = 0x1000, scoped, tag = 'output window, operand 0, single buffered']
    #allocation3 [shape = 's32[1]{0}', space=sflag, size = 0x4, scoped, tag = 'scoped memory for tpu_custom_call.1']
    %14 = vsyncpa [#allocation3], 0
    // Predicated region
    $region2: #{tpu_custom_call.1} parent=1 // pred_check
      _
    $region3: #{tpu_custom_call.1} parent=1 // pred_check_branch
      %16 = sbr.rel (0) target = $region5
    $region4: #{tpu_custom_call.1} parent=1 // pred_region
      _
    $region5: #{tpu_custom_call.1} parent=1 // pred_fallthru
      _
    // Predicated region
    $region6: #{tpu_custom_call.1} parent=1 // pred_check
      _
    $region7: #{tpu_custom_call.1} parent=1 // pred_check_branch
      %18 = sbr.rel (0) target = $region9
    $region8: #{tpu_custom_call.1} parent=1 // pred_region
      _
    $region9: #{tpu_custom_call.1} parent=1 // pred_fallthru
      _
    // Predicated region
    $region10: #{tpu_custom_call.1} parent=1 // pred_check
      _
    $region11: #{tpu_custom_call.1} parent=1 // pred_check_branch
      %20 = sbr.rel (0) target = $region13
    $region12: #{tpu_custom_call.1} parent=1 // pred_region
      _
    $region13: #{tpu_custom_call.1} parent=1 // pred_fallthru
      _
    // Predicated region
    $region14: #{tpu_custom_call.1} parent=1 // pred_check
      _
    $region15: #{tpu_custom_call.1} parent=1 // pred_check_branch
      %22 = sbr.rel (0) target = $region17
    $region16: #{tpu_custom_call.1} parent=1 // pred_region
      _
    $region17: #{tpu_custom_call.1} parent=1 // pred_fallthru
      _
    // Predicated region
    $region18: #{tpu_custom_call.1} parent=1 // pred_check
      _
    $region19: #{tpu_custom_call.1} parent=1 // pred_check_branch
      %24 = sbr.rel (0) target = $region21
    $region20: #{tpu_custom_call.1} parent=1 // pred_region
      _
    $region21: #{tpu_custom_call.1} parent=1 // pred_fallthru
      _
    // Predicated region
    $region22: #{tpu_custom_call.1} parent=1 // pred_check
      _
    $region23: #{tpu_custom_call.1} parent=1 // pred_check_branch
      %26 = sbr.rel (0) target = $region25
    $region24: #{tpu_custom_call.1} parent=1 // pred_region
      _
    $region25: #{tpu_custom_call.1} parent=1 // pred_fallthru
      _
    // Predicated region
    $region26: #{tpu_custom_call.1} parent=1 // pred_check
      _
    $region27: #{tpu_custom_call.1} parent=1 // pred_check_branch
      %28 = sbr.rel (0) target = $region29
    $region28: #{tpu_custom_call.1} parent=1 // pred_region
      _
    $region29: #{tpu_custom_call.1} parent=1 // pred_fallthru
      _
    // Predicated region
    $region30: #{tpu_custom_call.1} parent=1 // pred_check
      _
    $region31: #{tpu_custom_call.1} parent=1 // pred_check_branch
      %30 = sbr.rel (0) target = $region33
    $region32: #{tpu_custom_call.1} parent=1 // pred_region
      _
    $region33: #{tpu_custom_call.1} parent=1 // pred_fallthru
      _
    // Predicated region
    $region34: #{tpu_custom_call.1} parent=1 // pred_check
      _
    $region35: #{tpu_custom_call.1} parent=1 // pred_check_branch
      %32 = sbr.rel (0) target = $region37
    $region36: #{tpu_custom_call.1} parent=1 // pred_region
      _
    $region37: #{tpu_custom_call.1} parent=1 // pred_fallthru
      _
    %v33 = vld [vmem:[%s0] sm:$0xff]
    %v34 = vld [vmem:[%s0 + $0x8] sm:$0xff]
    %v35 = vld [vmem:[%s0 + $0x10] sm:$0xff]
    %v36 = vld [vmem:[%s0 + $0x18] sm:$0xff]
    %v37 = vld [vmem:[%s0 + $0x20] sm:$0xff]
    %v38 = vld [vmem:[%s0 + $0x28] sm:$0xff]
    %v39 = vld [vmem:[%s0 + $0x30] sm:$0xff]
    %v40 = vld [vmem:[%s1] sm:$0xff]
    %v41 = vld [vmem:[%s1 + $0x8] sm:$0xff]
    %v42 = vld [vmem:[%s2] sm:$0xff]
    %v43 = vld [vmem:[%s2 + $0x8] sm:$0xff]
    %v44 = vld [vmem:[%s2 + $0x10] sm:$0xff]
    %v45 = vld [vmem:[%s2 + $0x18] sm:$0xff]
    %v46 = vld [vmem:[%s3] sm:$0x1]
    %v48 = vlaneseq
    %v49 = vshrl.u32 %v48, 7
    %v50 = vsub.s32 0, %v49
    %v51 = vrot.slane %v46, %v50
    %vm53 = vcmask 130048
    %v55 = vsel %vm53, %v33, 0
    %v58 = vsel %vm53, %v34, 0
    %v61 = vsel %vm53, %v35, 0
    %v64 = vsel %vm53, %v36, 0
    %v67 = vsel %vm53, %v37, 0
    %v70 = vsel %vm53, %v38, 0
    %v73 = vsel %vm53, %v39, 0
    %75 = vmatprep.subr.mxu0 0.0
    %76 = vmatpush1.msra.mxu0 0.0
    %77 = vmatprep.subr.mxu0 0.0
    %78 = vmatpush1.msra.mxu0 0.0
    %79 = vmatprep.subr.mxu0 0.0
    %80 = vmatpush1.msra.mxu0 0.0
    %81 = vmatprep.subr.mxu0 0.0
    %82 = vmatpush1.msra.mxu0 0.0
    %83 = vmatprep.subr.mxu0 0.0
    %84 = vmatpush1.msra.mxu0 0.0
    %85 = vmatprep.subr.mxu0 0.0
    %86 = vmatpush1.msra.mxu0 0.0
    %87 = vmatprep.subr.mxu0 0.0
    %88 = vmatpush1.msra.mxu0 0.0
    %89 = vmatprep.subr.mxu0 0.0
    %90 = vmatpush1.msra.mxu0 0.0
    %91 = vmatprep.subr.mxu0 0.0
    %92 = vmatpush1.msra.mxu0 0.0
    %93 = vmatprep.subr.mxu0 0.0
    %94 = vmatpush1.msra.mxu0 0.0
    %95 = vmatprep.subr.mxu0 0.0
    %96 = vmatpush1.msra.mxu0 0.0
    %97 = vmatprep.subr.mxu0 0.0
    %98 = vmatpush1.msra.mxu0 0.0
    %99 = vmatprep.subr.mxu0 0.0
    %100 = vmatpush1.msra.mxu0 0.0
    %101 = vmatprep.subr.mxu0 0.0
    %102 = vmatpush1.msra.mxu0 0.0
    %103 = vmatprep.subr.mxu0 0.0
    %104 = vmatpush1.msra.mxu0 %v41
    %105 = vmatprep.subr.mxu0 0.0
    %106 = vmatpush1.msra.mxu0 %v40
    %107 = vmatprep.subr.mxu0 0.0
    %108 = vmatpush2.msra.mxu0 0.0
    %109 = vmatprep.subr.mxu0 0.0
    %110 = vmatpush2.msra.mxu0 0.0
    %111 = vmatprep.subr.mxu0 0.0
    %112 = vmatpush2.msra.mxu0 0.0
    %113 = vmatprep.subr.mxu0 0.0
    %114 = vmatpush2.msra.mxu0 0.0
    %115 = vmatprep.subr.mxu0 0.0
    %116 = vmatpush2.msra.mxu0 0.0
    %117 = vmatprep.subr.mxu0 0.0
    %118 = vmatpush2.msra.mxu0 0.0
    %119 = vmatprep.subr.mxu0 0.0
    %120 = vmatpush2.msra.mxu0 0.0
    %121 = vmatprep.subr.mxu0 0.0
    %122 = vmatpush2.msra.mxu0 0.0
    %123 = vmatprep.subr.mxu0 0.0
    %124 = vmatpush2.msra.mxu0 0.0
    %125 = vmatprep.subr.mxu0 0.0
    %126 = vmatpush2.msra.mxu0 0.0
    %127 = vmatprep.subr.mxu0 0.0
    %128 = vmatpush2.msra.mxu0 0.0
    %129 = vmatprep.subr.mxu0 0.0
    %130 = vmatpush2.msra.mxu0 0.0
    %131 = vmatprep.subr.mxu0 0.0
    %132 = vmatpush2.msra.mxu0 0.0
    %133 = vmatprep.subr.mxu0 0.0
    %134 = vmatpush2.msra.mxu0 0.0
    %135 = vmatprep.subr.mxu0 0.0
    %136 = vmatpush2.msra.mxu0 0.0
    %137 = vmatprep.subr.mxu0 0.0
    %138 = vmatpush2.msra.mxu0 0.0
    %139 = vmatprep.mubr.f32.mxu0 0.0
    %140 = vmatmul.mubr.f32.gmra.mxu0 %v55
    %v141 = vpop.f32.mrf.mxu0
    %v142 = vadd.f32 %v51, %v141
    %v143 = vpop.f32.mrf.mxu0
    %144 = vmatprep.mubr.f32.mxu0 0.0
    %145 = vmatmul.mubr.f32.gmra.mxu0 %v58
    %v146 = vpop.f32.mrf.mxu0
    %v147 = vadd.f32 %v51, %v146
    %v148 = vpop.f32.mrf.mxu0
    %149 = vmatprep.mubr.f32.mxu0 0.0
    %150 = vmatmul.mubr.f32.gmra.mxu0 %v61
    %v151 = vpop.f32.mrf.mxu0
    %v152 = vadd.f32 %v51, %v151
    %v153 = vpop.f32.mrf.mxu0
    %154 = vmatprep.mubr.f32.mxu0 0.0
    %155 = vmatmul.mubr.f32.gmra.mxu0 %v64
    %v156 = vpop.f32.mrf.mxu0
    %v157 = vadd.f32 %v51, %v156
    %v158 = vpop.f32.mrf.mxu0
    %159 = vmatprep.mubr.f32.mxu0 0.0
    %160 = vmatmul.mubr.f32.gmra.mxu0 %v67
    %v161 = vpop.f32.mrf.mxu0
    %v162 = vadd.f32 %v51, %v161
    %v163 = vpop.f32.mrf.mxu0
    %164 = vmatprep.mubr.f32.mxu0 0.0
    %165 = vmatmul.mubr.f32.gmra.mxu0 %v70
    %v166 = vpop.f32.mrf.mxu0
    %v167 = vadd.f32 %v51, %v166
    %v168 = vpop.f32.mrf.mxu0
    %169 = vmatprep.mubr.f32.mxu0 0.0
    %170 = vmatmul.mubr.f32.gmra.mxu0 %v73
    %v171 = vpop.f32.mrf.mxu0
    %v172 = vadd.f32 %v51, %v171
    %v173 = vpop.f32.mrf.mxu0
    %174 = vdwg.mxu0
    %vm175 = vcmask 261120
    %v177 = vsel %vm175, 0.0, 0
    %179 = vmatprep.subr.mxu0 0.0
    %180 = vmatpush1.msra.mxu0 0.0
    %181 = vmatprep.subr.mxu0 0.0
    %182 = vmatpush1.msra.mxu0 0.0
    %183 = vmatprep.subr.mxu0 0.0
    %184 = vmatpush1.msra.mxu0 0.0
    %185 = vmatprep.subr.mxu0 0.0
    %186 = vmatpush1.msra.mxu0 0.0
    %187 = vmatprep.subr.mxu0 0.0
    %188 = vmatpush1.msra.mxu0 0.0
    %189 = vmatprep.subr.mxu0 0.0
    %190 = vmatpush1.msra.mxu0 0.0
    %191 = vmatprep.subr.mxu0 0.0
    %192 = vmatpush1.msra.mxu0 0.0
    %193 = vmatprep.subr.mxu0 0.0
    %194 = vmatpush1.msra.mxu0 0.0
    %195 = vmatprep.subr.mxu0 0.0
    %196 = vmatpush1.msra.mxu0 0.0
    %197 = vmatprep.subr.mxu0 0.0
    %198 = vmatpush1.msra.mxu0 0.0
    %199 = vmatprep.subr.mxu0 0.0
    %200 = vmatpush1.msra.mxu0 0.0
    %201 = vmatprep.subr.mxu0 0.0
    %202 = vmatpush1.msra.mxu0 0.0
    %203 = vmatprep.subr.mxu0 0.0
    %204 = vmatpush1.msra.mxu0 %v45
    %205 = vmatprep.subr.mxu0 0.0
    %206 = vmatpush1.msra.mxu0 %v44
    %207 = vmatprep.subr.mxu0 0.0
    %208 = vmatpush1.msra.mxu0 %v43
    %209 = vmatprep.subr.mxu0 0.0
    %210 = vmatpush1.msra.mxu0 %v42
    %211 = vmatprep.subr.mxu0 0.0
    %212 = vmatpush2.msra.mxu0 0.0
    %213 = vmatprep.subr.mxu0 0.0
    %214 = vmatpush2.msra.mxu0 0.0
    %215 = vmatprep.subr.mxu0 0.0
    %216 = vmatpush2.msra.mxu0 0.0
    %217 = vmatprep.subr.mxu0 0.0
    %218 = vmatpush2.msra.mxu0 0.0
    %219 = vmatprep.subr.mxu0 0.0
    %220 = vmatpush2.msra.mxu0 0.0
    %221 = vmatprep.subr.mxu0 0.0
    %222 = vmatpush2.msra.mxu0 0.0
    %223 = vmatprep.subr.mxu0 0.0
    %224 = vmatpush2.msra.mxu0 0.0
    %225 = vmatprep.subr.mxu0 0.0
    %226 = vmatpush2.msra.mxu0 0.0
    %227 = vmatprep.subr.mxu0 0.0
    %228 = vmatpush2.msra.mxu0 0.0
    %229 = vmatprep.subr.mxu0 0.0
    %230 = vmatpush2.msra.mxu0 0.0
    %231 = vmatprep.subr.mxu0 0.0
    %232 = vmatpush2.msra.mxu0 0.0
    %233 = vmatprep.subr.mxu0 0.0
    %234 = vmatpush2.msra.mxu0 0.0
    %235 = vmatprep.subr.mxu0 0.0
    %236 = vmatpush2.msra.mxu0 0.0
    %237 = vmatprep.subr.mxu0 0.0
    %238 = vmatpush2.msra.mxu0 0.0
    %239 = vmatprep.subr.mxu0 0.0
    %240 = vmatpush2.msra.mxu0 0.0
    %241 = vmatprep.subr.mxu0 0.0
    %242 = vmatpush2.msra.mxu0 0.0
    %243 = vmatprep.mubr.f32.mxu0 0.0
    %244 = vmatmul.mubr.f32.gmra.mxu0 %v177
    %v245 = vpop.f32.mrf.mxu0
    %v246 = vadd.f32 0.0, %v245
    %v247 = vpop.f32.mrf.mxu0
    %248 = vdwg.mxu0
    %v249 = vadd.f32 %v142, %v246
    %v250 = vxor.u32 %v249, 2147483648
    %v251 = vmul.f32 %v250, 1.442695
    %v252 = vpow.pop %v251
    %v253 = vadd.f32 %v252, 1.0
    %v254 = vrcp.pop %v253
    %v255 = vmul.f32 1.0, %v254
    %v256 = vtanh.pop %v249
    %v257 = vmul.f32 %v255, 0.0
    %259 = vrot.lane.b32.xlu0 %v256, 64
    %v260 = vpop.permute.xlu0 %259
    %v262 = vmul.f32 %v255, %v260
    %264 = vrot.lane.b32.xlu0 %v262, 32
    %v265 = vpop.permute.xlu0 %264
    %v267 = vadd.f32 %v257, %v265
    %v268 = vtanh.pop %v267
    %270 = vrot.lane.b32.xlu0 %v268, 64
    %v271 = vpop.permute.xlu0 %270
    %v273 = vmul.f32 %v255, %v271
    %275 = vrot.lane.b32.xlu0 %v273, 32
    %v276 = vpop.permute.xlu0 %275
    %v277 = vsel %vm175, %v276, 0
    %279 = vmatprep.subr.mxu0 0.0
    %280 = vmatpush1.msra.mxu0 0.0
    %281 = vmatprep.subr.mxu0 0.0
    %282 = vmatpush1.msra.mxu0 0.0
    %283 = vmatprep.subr.mxu0 0.0
    %284 = vmatpush1.msra.mxu0 0.0
    %285 = vmatprep.subr.mxu0 0.0
    %286 = vmatpush1.msra.mxu0 0.0
    %287 = vmatprep.subr.mxu0 0.0
    %288 = vmatpush1.msra.mxu0 0.0
    %289 = vmatprep.subr.mxu0 0.0
    %290 = vmatpush1.msra.mxu0 0.0
    %291 = vmatprep.subr.mxu0 0.0
    %292 = vmatpush1.msra.mxu0 0.0
    %293 = vmatprep.subr.mxu0 0.0
    %294 = vmatpush1.msra.mxu0 0.0
    %295 = vmatprep.subr.mxu0 0.0
    %296 = vmatpush1.msra.mxu0 0.0
    %297 = vmatprep.subr.mxu0 0.0
    %298 = vmatpush1.msra.mxu0 0.0
    %299 = vmatprep.subr.mxu0 0.0
    %300 = vmatpush1.msra.mxu0 0.0
    %301 = vmatprep.subr.mxu0 0.0
    %302 = vmatpush1.msra.mxu0 0.0
    %303 = vmatprep.subr.mxu0 0.0
    %304 = vmatpush1.msra.mxu0 %v45
    %305 = vmatprep.subr.mxu0 0.0
    %306 = vmatpush1.msra.mxu0 %v44
    %307 = vmatprep.subr.mxu0 0.0
    %308 = vmatpush1.msra.mxu0 %v43
    %309 = vmatprep.subr.mxu0 0.0
    %310 = vmatpush1.msra.mxu0 %v42
    %311 = vmatprep.subr.mxu0 0.0
    %312 = vmatpush2.msra.mxu0 0.0
    %313 = vmatprep.subr.mxu0 0.0
    %314 = vmatpush2.msra.mxu0 0.0
    %315 = vmatprep.subr.mxu0 0.0
    %316 = vmatpush2.msra.mxu0 0.0
    %317 = vmatprep.subr.mxu0 0.0
    %318 = vmatpush2.msra.mxu0 0.0
    %319 = vmatprep.subr.mxu0 0.0
    %320 = vmatpush2.msra.mxu0 0.0
    %321 = vmatprep.subr.mxu0 0.0
    %322 = vmatpush2.msra.mxu0 0.0
    %323 = vmatprep.subr.mxu0 0.0
    %324 = vmatpush2.msra.mxu0 0.0
    %325 = vmatprep.subr.mxu0 0.0
    %326 = vmatpush2.msra.mxu0 0.0
    %327 = vmatprep.subr.mxu0 0.0
    %328 = vmatpush2.msra.mxu0 0.0
    %329 = vmatprep.subr.mxu0 0.0
    %330 = vmatpush2.msra.mxu0 0.0
    %331 = vmatprep.subr.mxu0 0.0
    %332 = vmatpush2.msra.mxu0 0.0
    %333 = vmatprep.subr.mxu0 0.0
    %334 = vmatpush2.msra.mxu0 0.0
    %335 = vmatprep.subr.mxu0 0.0
    %336 = vmatpush2.msra.mxu0 0.0
    %337 = vmatprep.subr.mxu0 0.0
    %338 = vmatpush2.msra.mxu0 0.0
    %339 = vmatprep.subr.mxu0 0.0
    %340 = vmatpush2.msra.mxu0 0.0
    %341 = vmatprep.subr.mxu0 0.0
    %342 = vmatpush2.msra.mxu0 0.0
    %343 = vmatprep.mubr.f32.mxu0 0.0
    %344 = vmatmul.mubr.f32.gmra.mxu0 %v277
    %v345 = vpop.f32.mrf.mxu0
    %v346 = vadd.f32 0.0, %v345
    %v347 = vpop.f32.mrf.mxu0
    %348 = vdwg.mxu0
    %v349 = vadd.f32 %v147, %v346
    %v350 = vxor.u32 %v349, 2147483648
    %v351 = vmul.f32 %v350, 1.442695
    %v352 = vpow.pop %v351
    %v353 = vadd.f32 %v352, 1.0
    %v354 = vrcp.pop %v353
    %v355 = vmul.f32 1.0, %v354
    %v356 = vtanh.pop %v349
    %v357 = vmul.f32 %v355, %v267
    %359 = vrot.lane.b32.xlu0 %v356, 64
    %v360 = vpop.permute.xlu0 %359
    %v362 = vmul.f32 %v355, %v360
    %364 = vrot.lane.b32.xlu0 %v362, 32
    %v365 = vpop.permute.xlu0 %364
    %v367 = vadd.f32 %v357, %v365
    %v368 = vtanh.pop %v367
    %370 = vrot.lane.b32.xlu0 %v368, 64
    %v371 = vpop.permute.xlu0 %370
    %v373 = vmul.f32 %v355, %v371
    %375 = vrot.lane.b32.xlu0 %v373, 32
    %v376 = vpop.permute.xlu0 %375
    %v377 = vsel %vm175, %v376, 0
    %379 = vmatprep.subr.mxu0 0.0
    %380 = vmatpush1.msra.mxu0 0.0
    %381 = vmatprep.subr.mxu0 0.0
    %382 = vmatpush1.msra.mxu0 0.0
    %383 = vmatprep.subr.mxu0 0.0
    %384 = vmatpush1.msra.mxu0 0.0
    %385 = vmatprep.subr.mxu0 0.0
    %386 = vmatpush1.msra.mxu0 0.0
    %387 = vmatprep.subr.mxu0 0.0
    %388 = vmatpush1.msra.mxu0 0.0
    %389 = vmatprep.subr.mxu0 0.0
    %390 = vmatpush1.msra.mxu0 0.0
    %391 = vmatprep.subr.mxu0 0.0
    %392 = vmatpush1.msra.mxu0 0.0
    %393 = vmatprep.subr.mxu0 0.0
    %394 = vmatpush1.msra.mxu0 0.0
    %395 = vmatprep.subr.mxu0 0.0
    %396 = vmatpush1.msra.mxu0 0.0
    %397 = vmatprep.subr.mxu0 0.0
    %398 = vmatpush1.msra.mxu0 0.0
    %399 = vmatprep.subr.mxu0 0.0
    %400 = vmatpush1.msra.mxu0 0.0
    %401 = vmatprep.subr.mxu0 0.0
    %402 = vmatpush1.msra.mxu0 0.0
    %403 = vmatprep.subr.mxu0 0.0
    %404 = vmatpush1.msra.mxu0 %v45
    %405 = vmatprep.subr.mxu0 0.0
    %406 = vmatpush1.msra.mxu0 %v44
    %407 = vmatprep.subr.mxu0 0.0
    %408 = vmatpush1.msra.mxu0 %v43
    %409 = vmatprep.subr.mxu0 0.0
    %410 = vmatpush1.msra.mxu0 %v42
    %411 = vmatprep.subr.mxu0 0.0
    %412 = vmatpush2.msra.mxu0 0.0
    %413 = vmatprep.subr.mxu0 0.0
    %414 = vmatpush2.msra.mxu0 0.0
    %415 = vmatprep.subr.mxu0 0.0
    %416 = vmatpush2.msra.mxu0 0.0
    %417 = vmatprep.subr.mxu0 0.0
    %418 = vmatpush2.msra.mxu0 0.0
    %419 = vmatprep.subr.mxu0 0.0
    %420 = vmatpush2.msra.mxu0 0.0
    %421 = vmatprep.subr.mxu0 0.0
    %422 = vmatpush2.msra.mxu0 0.0
    %423 = vmatprep.subr.mxu0 0.0
    %424 = vmatpush2.msra.mxu0 0.0
    %425 = vmatprep.subr.mxu0 0.0
    %426 = vmatpush2.msra.mxu0 0.0
    %427 = vmatprep.subr.mxu0 0.0
    %428 = vmatpush2.msra.mxu0 0.0
    %429 = vmatprep.subr.mxu0 0.0
    %430 = vmatpush2.msra.mxu0 0.0
    %431 = vmatprep.subr.mxu0 0.0
    %432 = vmatpush2.msra.mxu0 0.0
    %433 = vmatprep.subr.mxu0 0.0
    %434 = vmatpush2.msra.mxu0 0.0
    %435 = vmatprep.subr.mxu0 0.0
    %436 = vmatpush2.msra.mxu0 0.0
    %437 = vmatprep.subr.mxu0 0.0
    %438 = vmatpush2.msra.mxu0 0.0
    %439 = vmatprep.subr.mxu0 0.0
    %440 = vmatpush2.msra.mxu0 0.0
    %441 = vmatprep.subr.mxu0 0.0
    %442 = vmatpush2.msra.mxu0 0.0
    %443 = vmatprep.mubr.f32.mxu0 0.0
    %444 = vmatmul.mubr.f32.gmra.mxu0 %v377
    %v445 = vpop.f32.mrf.mxu0
    %v446 = vadd.f32 0.0, %v445
    %v447 = vpop.f32.mrf.mxu0
    %448 = vdwg.mxu0
    %v449 = vadd.f32 %v152, %v446
    %v450 = vxor.u32 %v449, 2147483648
    %v451 = vmul.f32 %v450, 1.442695
    %v452 = vpow.pop %v451
    %v453 = vadd.f32 %v452, 1.0
    %v454 = vrcp.pop %v453
    %v455 = vmul.f32 1.0, %v454
    %v456 = vtanh.pop %v449
    %v457 = vmul.f32 %v455, %v367
    %459 = vrot.lane.b32.xlu0 %v456, 64
    %v460 = vpop.permute.xlu0 %459
    %v462 = vmul.f32 %v455, %v460
    %464 = vrot.lane.b32.xlu0 %v462, 32
    %v465 = vpop.permute.xlu0 %464
    %v467 = vadd.f32 %v457, %v465
    %v468 = vtanh.pop %v467
    %470 = vrot.lane.b32.xlu0 %v468, 64
    %v471 = vpop.permute.xlu0 %470
    %v473 = vmul.f32 %v455, %v471
    %475 = vrot.lane.b32.xlu0 %v473, 32
    %v476 = vpop.permute.xlu0 %475
    %v477 = vsel %vm175, %v476, 0
    %479 = vmatprep.subr.mxu0 0.0
    %480 = vmatpush1.msra.mxu0 0.0
    %481 = vmatprep.subr.mxu0 0.0
    %482 = vmatpush1.msra.mxu0 0.0
    %483 = vmatprep.subr.mxu0 0.0
    %484 = vmatpush1.msra.mxu0 0.0
    %485 = vmatprep.subr.mxu0 0.0
    %486 = vmatpush1.msra.mxu0 0.0
    %487 = vmatprep.subr.mxu0 0.0
    %488 = vmatpush1.msra.mxu0 0.0
    %489 = vmatprep.subr.mxu0 0.0
    %490 = vmatpush1.msra.mxu0 0.0
    %491 = vmatprep.subr.mxu0 0.0
    %492 = vmatpush1.msra.mxu0 0.0
    %493 = vmatprep.subr.mxu0 0.0
    %494 = vmatpush1.msra.mxu0 0.0
    %495 = vmatprep.subr.mxu0 0.0
    %496 = vmatpush1.msra.mxu0 0.0
    %497 = vmatprep.subr.mxu0 0.0
    %498 = vmatpush1.msra.mxu0 0.0
    %499 = vmatprep.subr.mxu0 0.0
    %500 = vmatpush1.msra.mxu0 0.0
    %501 = vmatprep.subr.mxu0 0.0
    %502 = vmatpush1.msra.mxu0 0.0
    %503 = vmatprep.subr.mxu0 0.0
    %504 = vmatpush1.msra.mxu0 %v45
    %505 = vmatprep.subr.mxu0 0.0
    %506 = vmatpush1.msra.mxu0 %v44
    %507 = vmatprep.subr.mxu0 0.0
    %508 = vmatpush1.msra.mxu0 %v43
    %509 = vmatprep.subr.mxu0 0.0
    %510 = vmatpush1.msra.mxu0 %v42
    %511 = vmatprep.subr.mxu0 0.0
    %512 = vmatpush2.msra.mxu0 0.0
    %513 = vmatprep.subr.mxu0 0.0
    %514 = vmatpush2.msra.mxu0 0.0
    %515 = vmatprep.subr.mxu0 0.0
    %516 = vmatpush2.msra.mxu0 0.0
    %517 = vmatprep.subr.mxu0 0.0
    %518 = vmatpush2.msra.mxu0 0.0
    %519 = vmatprep.subr.mxu0 0.0
    %520 = vmatpush2.msra.mxu0 0.0
    %521 = vmatprep.subr.mxu0 0.0
    %522 = vmatpush2.msra.mxu0 0.0
    %523 = vmatprep.subr.mxu0 0.0
    %524 = vmatpush2.msra.mxu0 0.0
    %525 = vmatprep.subr.mxu0 0.0
    %526 = vmatpush2.msra.mxu0 0.0
    %527 = vmatprep.subr.mxu0 0.0
    %528 = vmatpush2.msra.mxu0 0.0
    %529 = vmatprep.subr.mxu0 0.0
    %530 = vmatpush2.msra.mxu0 0.0
    %531 = vmatprep.subr.mxu0 0.0
    %532 = vmatpush2.msra.mxu0 0.0
    %533 = vmatprep.subr.mxu0 0.0
    %534 = vmatpush2.msra.mxu0 0.0
    %535 = vmatprep.subr.mxu0 0.0
    %536 = vmatpush2.msra.mxu0 0.0
    %537 = vmatprep.subr.mxu0 0.0
    %538 = vmatpush2.msra.mxu0 0.0
    %539 = vmatprep.subr.mxu0 0.0
    %540 = vmatpush2.msra.mxu0 0.0
    %541 = vmatprep.subr.mxu0 0.0
    %542 = vmatpush2.msra.mxu0 0.0
    %543 = vmatprep.mubr.f32.mxu0 0.0
    %544 = vmatmul.mubr.f32.gmra.mxu0 %v477
    %v545 = vpop.f32.mrf.mxu0
    %v546 = vadd.f32 0.0, %v545
    %v547 = vpop.f32.mrf.mxu0
    %548 = vdwg.mxu0
    %v549 = vadd.f32 %v157, %v546
    %v550 = vxor.u32 %v549, 2147483648
    %v551 = vmul.f32 %v550, 1.442695
    %v552 = vpow.pop %v551
    %v553 = vadd.f32 %v552, 1.0
    %v554 = vrcp.pop %v553
    %v555 = vmul.f32 1.0, %v554
    %v556 = vtanh.pop %v549
    %v557 = vmul.f32 %v555, %v467
    %559 = vrot.lane.b32.xlu0 %v556, 64
    %v560 = vpop.permute.xlu0 %559
    %v562 = vmul.f32 %v555, %v560
    %564 = vrot.lane.b32.xlu0 %v562, 32
    %v565 = vpop.permute.xlu0 %564
    %v567 = vadd.f32 %v557, %v565
    %v568 = vtanh.pop %v567
    %570 = vrot.lane.b32.xlu0 %v568, 64
    %v571 = vpop.permute.xlu0 %570
    %v573 = vmul.f32 %v555, %v571
    %575 = vrot.lane.b32.xlu0 %v573, 32
    %v576 = vpop.permute.xlu0 %575
    %v577 = vsel %vm175, %v576, 0
    %579 = vmatprep.subr.mxu0 0.0
    %580 = vmatpush1.msra.mxu0 0.0
    %581 = vmatprep.subr.mxu0 0.0
    %582 = vmatpush1.msra.mxu0 0.0
    %583 = vmatprep.subr.mxu0 0.0
    %584 = vmatpush1.msra.mxu0 0.0
    %585 = vmatprep.subr.mxu0 0.0
    %586 = vmatpush1.msra.mxu0 0.0
    %587 = vmatprep.subr.mxu0 0.0
    %588 = vmatpush1.msra.mxu0 0.0
    %589 = vmatprep.subr.mxu0 0.0
    %590 = vmatpush1.msra.mxu0 0.0
    %591 = vmatprep.subr.mxu0 0.0
    %592 = vmatpush1.msra.mxu0 0.0
    %593 = vmatprep.subr.mxu0 0.0
    %594 = vmatpush1.msra.mxu0 0.0
    %595 = vmatprep.subr.mxu0 0.0
    %596 = vmatpush1.msra.mxu0 0.0
    %597 = vmatprep.subr.mxu0 0.0
    %598 = vmatpush1.msra.mxu0 0.0
    %599 = vmatprep.subr.mxu0 0.0
    %600 = vmatpush1.msra.mxu0 0.0
    %601 = vmatprep.subr.mxu0 0.0
    %602 = vmatpush1.msra.mxu0 0.0
    %603 = vmatprep.subr.mxu0 0.0
    %604 = vmatpush1.msra.mxu0 %v45
    %605 = vmatprep.subr.mxu0 0.0
    %606 = vmatpush1.msra.mxu0 %v44
    %607 = vmatprep.subr.mxu0 0.0
    %608 = vmatpush1.msra.mxu0 %v43
    %609 = vmatprep.subr.mxu0 0.0
    %610 = vmatpush1.msra.mxu0 %v42
    %611 = vmatprep.subr.mxu0 0.0
    %612 = vmatpush2.msra.mxu0 0.0
    %613 = vmatprep.subr.mxu0 0.0
    %614 = vmatpush2.msra.mxu0 0.0
    %615 = vmatprep.subr.mxu0 0.0
    %616 = vmatpush2.msra.mxu0 0.0
    %617 = vmatprep.subr.mxu0 0.0
    %618 = vmatpush2.msra.mxu0 0.0
    %619 = vmatprep.subr.mxu0 0.0
    %620 = vmatpush2.msra.mxu0 0.0
    %621 = vmatprep.subr.mxu0 0.0
    %622 = vmatpush2.msra.mxu0 0.0
    %623 = vmatprep.subr.mxu0 0.0
    %624 = vmatpush2.msra.mxu0 0.0
    %625 = vmatprep.subr.mxu0 0.0
    %626 = vmatpush2.msra.mxu0 0.0
    %627 = vmatprep.subr.mxu0 0.0
    %628 = vmatpush2.msra.mxu0 0.0
    %629 = vmatprep.subr.mxu0 0.0
    %630 = vmatpush2.msra.mxu0 0.0
    %631 = vmatprep.subr.mxu0 0.0
    %632 = vmatpush2.msra.mxu0 0.0
    %633 = vmatprep.subr.mxu0 0.0
    %634 = vmatpush2.msra.mxu0 0.0
    %635 = vmatprep.subr.mxu0 0.0
    %636 = vmatpush2.msra.mxu0 0.0
    %637 = vmatprep.subr.mxu0 0.0
    %638 = vmatpush2.msra.mxu0 0.0
    %639 = vmatprep.subr.mxu0 0.0
    %640 = vmatpush2.msra.mxu0 0.0
    %641 = vmatprep.subr.mxu0 0.0
    %642 = vmatpush2.msra.mxu0 0.0
    %643 = vmatprep.mubr.f32.mxu0 0.0
    %644 = vmatmul.mubr.f32.gmra.mxu0 %v577
    %v645 = vpop.f32.mrf.mxu0
    %v646 = vadd.f32 0.0, %v645
    %v647 = vpop.f32.mrf.mxu0
    %648 = vdwg.mxu0
    %v649 = vadd.f32 %v162, %v646
    %v650 = vxor.u32 %v649, 2147483648
    %v651 = vmul.f32 %v650, 1.442695
    %v652 = vpow.pop %v651
    %v653 = vadd.f32 %v652, 1.0
    %v654 = vrcp.pop %v653
    %v655 = vmul.f32 1.0, %v654
    %v656 = vtanh.pop %v649
    %v657 = vmul.f32 %v655, %v567
    %659 = vrot.lane.b32.xlu0 %v656, 64
    %v660 = vpop.permute.xlu0 %659
    %v662 = vmul.f32 %v655, %v660
    %664 = vrot.lane.b32.xlu0 %v662, 32
    %v665 = vpop.permute.xlu0 %664
    %v667 = vadd.f32 %v657, %v665
    %v668 = vtanh.pop %v667
    %670 = vrot.lane.b32.xlu0 %v668, 64
    %v671 = vpop.permute.xlu0 %670
    %v673 = vmul.f32 %v655, %v671
    %675 = vrot.lane.b32.xlu0 %v673, 32
    %v676 = vpop.permute.xlu0 %675
    %v677 = vsel %vm175, %v676, 0
    %679 = vmatprep.subr.mxu0 0.0
    %680 = vmatpush1.msra.mxu0 0.0
    %681 = vmatprep.subr.mxu0 0.0
    %682 = vmatpush1.msra.mxu0 0.0
    %683 = vmatprep.subr.mxu0 0.0
    %684 = vmatpush1.msra.mxu0 0.0
    %685 = vmatprep.subr.mxu0 0.0
    %686 = vmatpush1.msra.mxu0 0.0
    %687 = vmatprep.subr.mxu0 0.0
    %688 = vmatpush1.msra.mxu0 0.0
    %689 = vmatprep.subr.mxu0 0.0
    %690 = vmatpush1.msra.mxu0 0.0
    %691 = vmatprep.subr.mxu0 0.0
    %692 = vmatpush1.msra.mxu0 0.0
    %693 = vmatprep.subr.mxu0 0.0
    %694 = vmatpush1.msra.mxu0 0.0
    %695 = vmatprep.subr.mxu0 0.0
    %696 = vmatpush1.msra.mxu0 0.0
    %697 = vmatprep.subr.mxu0 0.0
    %698 = vmatpush1.msra.mxu0 0.0
    %699 = vmatprep.subr.mxu0 0.0
    %700 = vmatpush1.msra.mxu0 0.0
    %701 = vmatprep.subr.mxu0 0.0
    %702 = vmatpush1.msra.mxu0 0.0
    %703 = vmatprep.subr.mxu0 0.0
    %704 = vmatpush1.msra.mxu0 %v45
    %705 = vmatprep.subr.mxu0 0.0
    %706 = vmatpush1.msra.mxu0 %v44
    %707 = vmatprep.subr.mxu0 0.0
    %708 = vmatpush1.msra.mxu0 %v43
    %709 = vmatprep.subr.mxu0 0.0
    %710 = vmatpush1.msra.mxu0 %v42
    %711 = vmatprep.subr.mxu0 0.0
    %712 = vmatpush2.msra.mxu0 0.0
    %713 = vmatprep.subr.mxu0 0.0
    %714 = vmatpush2.msra.mxu0 0.0
    %715 = vmatprep.subr.mxu0 0.0
    %716 = vmatpush2.msra.mxu0 0.0
    %717 = vmatprep.subr.mxu0 0.0
    %718 = vmatpush2.msra.mxu0 0.0
    %719 = vmatprep.subr.mxu0 0.0
    %720 = vmatpush2.msra.mxu0 0.0
    %721 = vmatprep.subr.mxu0 0.0
    %722 = vmatpush2.msra.mxu0 0.0
    %723 = vmatprep.subr.mxu0 0.0
    %724 = vmatpush2.msra.mxu0 0.0
    %725 = vmatprep.subr.mxu0 0.0
    %726 = vmatpush2.msra.mxu0 0.0
    %727 = vmatprep.subr.mxu0 0.0
    %728 = vmatpush2.msra.mxu0 0.0
    %729 = vmatprep.subr.mxu0 0.0
    %730 = vmatpush2.msra.mxu0 0.0
    %731 = vmatprep.subr.mxu0 0.0
    %732 = vmatpush2.msra.mxu0 0.0
    %733 = vmatprep.subr.mxu0 0.0
    %734 = vmatpush2.msra.mxu0 0.0
    %735 = vmatprep.subr.mxu0 0.0
    %736 = vmatpush2.msra.mxu0 0.0
    %737 = vmatprep.subr.mxu0 0.0
    %738 = vmatpush2.msra.mxu0 0.0
    %739 = vmatprep.subr.mxu0 0.0
    %740 = vmatpush2.msra.mxu0 0.0
    %741 = vmatprep.subr.mxu0 0.0
    %742 = vmatpush2.msra.mxu0 0.0
    %743 = vmatprep.mubr.f32.mxu0 0.0
    %744 = vmatmul.mubr.f32.gmra.mxu0 %v677
    %v745 = vpop.f32.mrf.mxu0
    %v746 = vadd.f32 0.0, %v745
    %v747 = vpop.f32.mrf.mxu0
    %748 = vdwg.mxu0
    %v749 = vadd.f32 %v167, %v746
    %v750 = vxor.u32 %v749, 2147483648
    %v751 = vmul.f32 %v750, 1.442695
    %v752 = vpow.pop %v751
    %v753 = vadd.f32 %v752, 1.0
    %v754 = vrcp.pop %v753
    %v755 = vmul.f32 1.0, %v754
    %v756 = vtanh.pop %v749
    %v757 = vmul.f32 %v755, %v667
    %759 = vrot.lane.b32.xlu0 %v756, 64
    %v760 = vpop.permute.xlu0 %759
    %v762 = vmul.f32 %v755, %v760
    %764 = vrot.lane.b32.xlu0 %v762, 32
    %v765 = vpop.permute.xlu0 %764
    %v767 = vadd.f32 %v757, %v765
    %v768 = vtanh.pop %v767
    %770 = vrot.lane.b32.xlu0 %v768, 64
    %v771 = vpop.permute.xlu0 %770
    %v773 = vmul.f32 %v755, %v771
    %775 = vrot.lane.b32.xlu0 %v773, 32
    %v776 = vpop.permute.xlu0 %775
    %v777 = vsel %vm175, %v776, 0
    %779 = vmatprep.subr.mxu0 0.0
    %780 = vmatpush1.msra.mxu0 0.0
    %781 = vmatprep.subr.mxu0 0.0
    %782 = vmatpush1.msra.mxu0 0.0
    %783 = vmatprep.subr.mxu0 0.0
    %784 = vmatpush1.msra.mxu0 0.0
    %785 = vmatprep.subr.mxu0 0.0
    %786 = vmatpush1.msra.mxu0 0.0
    %787 = vmatprep.subr.mxu0 0.0
    %788 = vmatpush1.msra.mxu0 0.0
    %789 = vmatprep.subr.mxu0 0.0
    %790 = vmatpush1.msra.mxu0 0.0
    %791 = vmatprep.subr.mxu0 0.0
    %792 = vmatpush1.msra.mxu0 0.0
    %793 = vmatprep.subr.mxu0 0.0
    %794 = vmatpush1.msra.mxu0 0.0
    %795 = vmatprep.subr.mxu0 0.0
    %796 = vmatpush1.msra.mxu0 0.0
    %797 = vmatprep.subr.mxu0 0.0
    %798 = vmatpush1.msra.mxu0 0.0
    %799 = vmatprep.subr.mxu0 0.0
    %800 = vmatpush1.msra.mxu0 0.0
    %801 = vmatprep.subr.mxu0 0.0
    %802 = vmatpush1.msra.mxu0 0.0
    %803 = vmatprep.subr.mxu0 0.0
    %804 = vmatpush1.msra.mxu0 %v45
    %805 = vmatprep.subr.mxu0 0.0
    %806 = vmatpush1.msra.mxu0 %v44
    %807 = vmatprep.subr.mxu0 0.0
    %808 = vmatpush1.msra.mxu0 %v43
    %809 = vmatprep.subr.mxu0 0.0
    %810 = vmatpush1.msra.mxu0 %v42
    %811 = vmatprep.subr.mxu0 0.0
    %812 = vmatpush2.msra.mxu0 0.0
    %813 = vmatprep.subr.mxu0 0.0
    %814 = vmatpush2.msra.mxu0 0.0
    %815 = vmatprep.subr.mxu0 0.0
    %816 = vmatpush2.msra.mxu0 0.0
    %817 = vmatprep.subr.mxu0 0.0
    %818 = vmatpush2.msra.mxu0 0.0
    %819 = vmatprep.subr.mxu0 0.0
    %820 = vmatpush2.msra.mxu0 0.0
    %821 = vmatprep.subr.mxu0 0.0
    %822 = vmatpush2.msra.mxu0 0.0
    %823 = vmatprep.subr.mxu0 0.0
    %824 = vmatpush2.msra.mxu0 0.0
    %825 = vmatprep.subr.mxu0 0.0
    %826 = vmatpush2.msra.mxu0 0.0
    %827 = vmatprep.subr.mxu0 0.0
    %828 = vmatpush2.msra.mxu0 0.0
    %829 = vmatprep.subr.mxu0 0.0
    %830 = vmatpush2.msra.mxu0 0.0
    %831 = vmatprep.subr.mxu0 0.0
    %832 = vmatpush2.msra.mxu0 0.0
    %833 = vmatprep.subr.mxu0 0.0
    %834 = vmatpush2.msra.mxu0 0.0
    %835 = vmatprep.subr.mxu0 0.0
    %836 = vmatpush2.msra.mxu0 0.0
    %837 = vmatprep.subr.mxu0 0.0
    %838 = vmatpush2.msra.mxu0 0.0
    %839 = vmatprep.subr.mxu0 0.0
    %840 = vmatpush2.msra.mxu0 0.0
    %841 = vmatprep.subr.mxu0 0.0
    %842 = vmatpush2.msra.mxu0 0.0
    %843 = vmatprep.mubr.f32.mxu0 0.0
    %844 = vmatmul.mubr.f32.gmra.mxu0 %v777
    %v845 = vpop.f32.mrf.mxu0
    %v846 = vadd.f32 0.0, %v845
    %v847 = vpop.f32.mrf.mxu0
    %848 = vdwg.mxu0
    %v849 = vadd.f32 %v172, %v846
    %v850 = vxor.u32 %v849, 2147483648
    %v851 = vmul.f32 %v850, 1.442695
    %v852 = vpow.pop %v851
    %v853 = vadd.f32 %v852, 1.0
    %v854 = vrcp.pop %v853
    %v855 = vmul.f32 1.0, %v854
    %v856 = vtanh.pop %v849
    %v857 = vmul.f32 %v855, %v767
    %859 = vrot.lane.b32.xlu0 %v856, 64
    %v860 = vpop.permute.xlu0 %859
    %v862 = vmul.f32 %v855, %v860
    %864 = vrot.lane.b32.xlu0 %v862, 32
    %v865 = vpop.permute.xlu0 %864
    %v867 = vadd.f32 %v857, %v865
    %v868 = vtanh.pop %v867
    %870 = vrot.lane.b32.xlu0 %v868, 64
    %v871 = vpop.permute.xlu0 %870
    %v873 = vmul.f32 %v855, %v871
    %v874 = vld [vmem:[%s4] sm:$0xff]
    %v875 = vld [vmem:[%s4 + $0x8] sm:$0xff]
    %v876 = vld [vmem:[%s4 + $0x10] sm:$0xff]
    %v877 = vld [vmem:[%s4 + $0x18] sm:$0xff]
    %v878 = vld [vmem:[%s5] sm:$0xff]
    %v879 = vld [vmem:[%s5 + $0x8] sm:$0xff]
    %v880 = vld [vmem:[%s5 + $0x10] sm:$0xff]
    %v881 = vld [vmem:[%s5 + $0x18] sm:$0xff]
    %v882 = vld [vmem:[%s6] sm:$0x1]
    %v884 = vlaneseq
    %v885 = vshrl.u32 %v884, 7
    %v886 = vsub.s32 0, %v885
    %v887 = vrot.slane %v882, %v886
    %890 = vrot.lane.b32.xlu0 %v873, 32
    %v891 = vpop.permute.xlu0 %890
    %v892 = vsel %vm175, %v891, 0
    %894 = vmatprep.subr.mxu0 0.0
    %895 = vmatpush1.msra.mxu0 0.0
    %896 = vmatprep.subr.mxu0 0.0
    %897 = vmatpush1.msra.mxu0 0.0
    %898 = vmatprep.subr.mxu0 0.0
    %899 = vmatpush1.msra.mxu0 0.0
    %900 = vmatprep.subr.mxu0 0.0
    %901 = vmatpush1.msra.mxu0 0.0
    %902 = vmatprep.subr.mxu0 0.0
    %903 = vmatpush1.msra.mxu0 0.0
    %904 = vmatprep.subr.mxu0 0.0
    %905 = vmatpush1.msra.mxu0 0.0
    %906 = vmatprep.subr.mxu0 0.0
    %907 = vmatpush1.msra.mxu0 0.0
    %908 = vmatprep.subr.mxu0 0.0
    %909 = vmatpush1.msra.mxu0 0.0
    %910 = vmatprep.subr.mxu0 0.0
    %911 = vmatpush1.msra.mxu0 0.0
    %912 = vmatprep.subr.mxu0 0.0
    %913 = vmatpush1.msra.mxu0 0.0
    %914 = vmatprep.subr.mxu0 0.0
    %915 = vmatpush1.msra.mxu0 0.0
    %916 = vmatprep.subr.mxu0 0.0
    %917 = vmatpush1.msra.mxu0 0.0
    %918 = vmatprep.subr.mxu0 0.0
    %919 = vmatpush1.msra.mxu0 %v877
    %920 = vmatprep.subr.mxu0 0.0
    %921 = vmatpush1.msra.mxu0 %v876
    %922 = vmatprep.subr.mxu0 0.0
    %923 = vmatpush1.msra.mxu0 %v875
    %924 = vmatprep.subr.mxu0 0.0
    %925 = vmatpush1.msra.mxu0 %v874
    %926 = vmatprep.subr.mxu0 0.0
    %927 = vmatpush2.msra.mxu0 0.0
    %928 = vmatprep.subr.mxu0 0.0
    %929 = vmatpush2.msra.mxu0 0.0
    %930 = vmatprep.subr.mxu0 0.0
    %931 = vmatpush2.msra.mxu0 0.0
    %932 = vmatprep.subr.mxu0 0.0
    %933 = vmatpush2.msra.mxu0 0.0
    %934 = vmatprep.subr.mxu0 0.0
    %935 = vmatpush2.msra.mxu0 0.0
    %936 = vmatprep.subr.mxu0 0.0
    %937 = vmatpush2.msra.mxu0 0.0
    %938 = vmatprep.subr.mxu0 0.0
    %939 = vmatpush2.msra.mxu0 0.0
    %940 = vmatprep.subr.mxu0 0.0
    %941 = vmatpush2.msra.mxu0 0.0
    %942 = vmatprep.subr.mxu0 0.0
    %943 = vmatpush2.msra.mxu0 0.0
    %944 = vmatprep.subr.mxu0 0.0
    %945 = vmatpush2.msra.mxu0 0.0
    %946 = vmatprep.subr.mxu0 0.0
    %947 = vmatpush2.msra.mxu0 0.0
    %948 = vmatprep.subr.mxu0 0.0
    %949 = vmatpush2.msra.mxu0 0.0
    %950 = vmatprep.subr.mxu0 0.0
    %951 = vmatpush2.msra.mxu0 0.0
    %952 = vmatprep.subr.mxu0 0.0
    %953 = vmatpush2.msra.mxu0 0.0
    %954 = vmatprep.subr.mxu0 0.0
    %955 = vmatpush2.msra.mxu0 0.0
    %956 = vmatprep.subr.mxu0 0.0
    %957 = vmatpush2.msra.mxu0 0.0
    %958 = vmatprep.mubr.f32.mxu0 0.0
    %959 = vmatmul.mubr.f32.gmra.mxu0 %v277
    %v960 = vpop.f32.mrf.mxu0
    %v961 = vadd.f32 %v887, %v960
    %v962 = vpop.f32.mrf.mxu0
    %963 = vmatprep.mubr.f32.mxu0 0.0
    %964 = vmatmul.mubr.f32.gmra.mxu0 %v377
    %v965 = vpop.f32.mrf.mxu0
    %v966 = vadd.f32 %v887, %v965
    %v967 = vpop.f32.mrf.mxu0
    %968 = vmatprep.mubr.f32.mxu0 0.0
    %969 = vmatmul.mubr.f32.gmra.mxu0 %v477
    %v970 = vpop.f32.mrf.mxu0
    %v971 = vadd.f32 %v887, %v970
    %v972 = vpop.f32.mrf.mxu0
    %973 = vmatprep.mubr.f32.mxu0 0.0
    %974 = vmatmul.mubr.f32.gmra.mxu0 %v577
    %v975 = vpop.f32.mrf.mxu0
    %v976 = vadd.f32 %v887, %v975
    %v977 = vpop.f32.mrf.mxu0
    %978 = vmatprep.mubr.f32.mxu0 0.0
    %979 = vmatmul.mubr.f32.gmra.mxu0 %v677
    %v980 = vpop.f32.mrf.mxu0
    %v981 = vadd.f32 %v887, %v980
    %v982 = vpop.f32.mrf.mxu0
    %983 = vmatprep.mubr.f32.mxu0 0.0
    %984 = vmatmul.mubr.f32.gmra.mxu0 %v777
    %v985 = vpop.f32.mrf.mxu0
    %v986 = vadd.f32 %v887, %v985
    %v987 = vpop.f32.mrf.mxu0
    %988 = vmatprep.mubr.f32.mxu0 0.0
    %989 = vmatmul.mubr.f32.gmra.mxu0 %v892
    %v990 = vpop.f32.mrf.mxu0
    %v991 = vadd.f32 %v887, %v990
    %v992 = vpop.f32.mrf.mxu0
    %993 = vdwg.mxu0
    %994 = vmatprep.subr.mxu0 0.0
    %995 = vmatpush1.msra.mxu0 0.0
    %996 = vmatprep.subr.mxu0 0.0
    %997 = vmatpush1.msra.mxu0 0.0
    %998 = vmatprep.subr.mxu0 0.0
    %999 = vmatpush1.msra.mxu0 0.0
    %1000 = vmatprep.subr.mxu0 0.0
    %1001 = vmatpush1.msra.mxu0 0.0
    %1002 = vmatprep.subr.mxu0 0.0
    %1003 = vmatpush1.msra.mxu0 0.0
    %1004 = vmatprep.subr.mxu0 0.0
    %1005 = vmatpush1.msra.mxu0 0.0
    %1006 = vmatprep.subr.mxu0 0.0
    %1007 = vmatpush1.msra.mxu0 0.0
    %1008 = vmatprep.subr.mxu0 0.0
    %1009 = vmatpush1.msra.mxu0 0.0
    %1010 = vmatprep.subr.mxu0 0.0
    %1011 = vmatpush1.msra.mxu0 0.0
    %1012 = vmatprep.subr.mxu0 0.0
    %1013 = vmatpush1.msra.mxu0 0.0
    %1014 = vmatprep.subr.mxu0 0.0
    %1015 = vmatpush1.msra.mxu0 0.0
    %1016 = vmatprep.subr.mxu0 0.0
    %1017 = vmatpush1.msra.mxu0 0.0
    %1018 = vmatprep.subr.mxu0 0.0
    %1019 = vmatpush1.msra.mxu0 %v881
    %1020 = vmatprep.subr.mxu0 0.0
    %1021 = vmatpush1.msra.mxu0 %v880
    %1022 = vmatprep.subr.mxu0 0.0
    %1023 = vmatpush1.msra.mxu0 %v879
    %1024 = vmatprep.subr.mxu0 0.0
    %1025 = vmatpush1.msra.mxu0 %v878
    %1026 = vmatprep.subr.mxu0 0.0
    %1027 = vmatpush2.msra.mxu0 0.0
    %1028 = vmatprep.subr.mxu0 0.0
    %1029 = vmatpush2.msra.mxu0 0.0
    %1030 = vmatprep.subr.mxu0 0.0
    %1031 = vmatpush2.msra.mxu0 0.0
    %1032 = vmatprep.subr.mxu0 0.0
    %1033 = vmatpush2.msra.mxu0 0.0
    %1034 = vmatprep.subr.mxu0 0.0
    %1035 = vmatpush2.msra.mxu0 0.0
    %1036 = vmatprep.subr.mxu0 0.0
    %1037 = vmatpush2.msra.mxu0 0.0
    %1038 = vmatprep.subr.mxu0 0.0
    %1039 = vmatpush2.msra.mxu0 0.0
    %1040 = vmatprep.subr.mxu0 0.0
    %1041 = vmatpush2.msra.mxu0 0.0
    %1042 = vmatprep.subr.mxu0 0.0
    %1043 = vmatpush2.msra.mxu0 0.0
    %1044 = vmatprep.subr.mxu0 0.0
    %1045 = vmatpush2.msra.mxu0 0.0
    %1046 = vmatprep.subr.mxu0 0.0
    %1047 = vmatpush2.msra.mxu0 0.0
    %1048 = vmatprep.subr.mxu0 0.0
    %1049 = vmatpush2.msra.mxu0 0.0
    %1050 = vmatprep.subr.mxu0 0.0
    %1051 = vmatpush2.msra.mxu0 0.0
    %1052 = vmatprep.subr.mxu0 0.0
    %1053 = vmatpush2.msra.mxu0 0.0
    %1054 = vmatprep.subr.mxu0 0.0
    %1055 = vmatpush2.msra.mxu0 0.0
    %1056 = vmatprep.subr.mxu0 0.0
    %1057 = vmatpush2.msra.mxu0 0.0
    %1058 = vmatprep.mubr.f32.mxu0 0.0
    %1059 = vmatmul.mubr.f32.gmra.mxu0 %v177
    %v1060 = vpop.f32.mrf.mxu0
    %v1061 = vadd.f32 0.0, %v1060
    %v1062 = vpop.f32.mrf.mxu0
    %1063 = vdwg.mxu0
    %v1064 = vadd.f32 %v961, %v1061
    %v1065 = vxor.u32 %v1064, 2147483648
    %v1066 = vmul.f32 %v1065, 1.442695
    %v1067 = vpow.pop %v1066
    %v1068 = vadd.f32 %v1067, 1.0
    %v1069 = vrcp.pop %v1068
    %v1070 = vmul.f32 1.0, %v1069
    %v1071 = vtanh.pop %v1064
    %v1072 = vmul.f32 %v1070, 0.0
    %1074 = vrot.lane.b32.xlu0 %v1071, 64
    %v1075 = vpop.permute.xlu0 %1074
    %v1077 = vmul.f32 %v1070, %v1075
    %1079 = vrot.lane.b32.xlu0 %v1077, 32
    %v1080 = vpop.permute.xlu0 %1079
    %v1082 = vadd.f32 %v1072, %v1080
    %v1083 = vtanh.pop %v1082
    %1085 = vrot.lane.b32.xlu0 %v1083, 64
    %v1086 = vpop.permute.xlu0 %1085
    %v1088 = vmul.f32 %v1070, %v1086
    %1090 = vrot.lane.b32.xlu0 %v1088, 32
    %v1091 = vpop.permute.xlu0 %1090
    %v1092 = vsel %vm175, %v1091, 0
    %1094 = vmatprep.subr.mxu0 0.0
    %1095 = vmatpush1.msra.mxu0 0.0
    %1096 = vmatprep.subr.mxu0 0.0
    %1097 = vmatpush1.msra.mxu0 0.0
    %1098 = vmatprep.subr.mxu0 0.0
    %1099 = vmatpush1.msra.mxu0 0.0
    %1100 = vmatprep.subr.mxu0 0.0
    %1101 = vmatpush1.msra.mxu0 0.0
    %1102 = vmatprep.subr.mxu0 0.0
    %1103 = vmatpush1.msra.mxu0 0.0
    %1104 = vmatprep.subr.mxu0 0.0
    %1105 = vmatpush1.msra.mxu0 0.0
    %1106 = vmatprep.subr.mxu0 0.0
    %1107 = vmatpush1.msra.mxu0 0.0
    %1108 = vmatprep.subr.mxu0 0.0
    %1109 = vmatpush1.msra.mxu0 0.0
    %1110 = vmatprep.subr.mxu0 0.0
    %1111 = vmatpush1.msra.mxu0 0.0
    %1112 = vmatprep.subr.mxu0 0.0
    %1113 = vmatpush1.msra.mxu0 0.0
    %1114 = vmatprep.subr.mxu0 0.0
    %1115 = vmatpush1.msra.mxu0 0.0
    %1116 = vmatprep.subr.mxu0 0.0
    %1117 = vmatpush1.msra.mxu0 0.0
    %1118 = vmatprep.subr.mxu0 0.0
    %1119 = vmatpush1.msra.mxu0 %v881
    %1120 = vmatprep.subr.mxu0 0.0
    %1121 = vmatpush1.msra.mxu0 %v880
    %1122 = vmatprep.subr.mxu0 0.0
    %1123 = vmatpush1.msra.mxu0 %v879
    %1124 = vmatprep.subr.mxu0 0.0
    %1125 = vmatpush1.msra.mxu0 %v878
    %1126 = vmatprep.subr.mxu0 0.0
    %1127 = vmatpush2.msra.mxu0 0.0
    %1128 = vmatprep.subr.mxu0 0.0
    %1129 = vmatpush2.msra.mxu0 0.0
    %1130 = vmatprep.subr.mxu0 0.0
    %1131 = vmatpush2.msra.mxu0 0.0
    %1132 = vmatprep.subr.mxu0 0.0
    %1133 = vmatpush2.msra.mxu0 0.0
    %1134 = vmatprep.subr.mxu0 0.0
    %1135 = vmatpush2.msra.mxu0 0.0
    %1136 = vmatprep.subr.mxu0 0.0
    %1137 = vmatpush2.msra.mxu0 0.0
    %1138 = vmatprep.subr.mxu0 0.0
    %1139 = vmatpush2.msra.mxu0 0.0
    %1140 = vmatprep.subr.mxu0 0.0
    %1141 = vmatpush2.msra.mxu0 0.0
    %1142 = vmatprep.subr.mxu0 0.0
    %1143 = vmatpush2.msra.mxu0 0.0
    %1144 = vmatprep.subr.mxu0 0.0
    %1145 = vmatpush2.msra.mxu0 0.0
    %1146 = vmatprep.subr.mxu0 0.0
    %1147 = vmatpush2.msra.mxu0 0.0
    %1148 = vmatprep.subr.mxu0 0.0
    %1149 = vmatpush2.msra.mxu0 0.0
    %1150 = vmatprep.subr.mxu0 0.0
    %1151 = vmatpush2.msra.mxu0 0.0
    %1152 = vmatprep.subr.mxu0 0.0
    %1153 = vmatpush2.msra.mxu0 0.0
    %1154 = vmatprep.subr.mxu0 0.0
    %1155 = vmatpush2.msra.mxu0 0.0
    %1156 = vmatprep.subr.mxu0 0.0
    %1157 = vmatpush2.msra.mxu0 0.0
    %1158 = vmatprep.mubr.f32.mxu0 0.0
    %1159 = vmatmul.mubr.f32.gmra.mxu0 %v1092
    %v1160 = vpop.f32.mrf.mxu0
    %v1161 = vadd.f32 0.0, %v1160
    %v1162 = vpop.f32.mrf.mxu0
    %1163 = vdwg.mxu0
    %v1164 = vadd.f32 %v966, %v1161
    %v1165 = vxor.u32 %v1164, 2147483648
    %v1166 = vmul.f32 %v1165, 1.442695
    %v1167 = vpow.pop %v1166
    %v1168 = vadd.f32 %v1167, 1.0
    %v1169 = vrcp.pop %v1168
    %v1170 = vmul.f32 1.0, %v1169
    %v1171 = vtanh.pop %v1164
    %v1172 = vmul.f32 %v1170, %v1082
    %1174 = vrot.lane.b32.xlu0 %v1171, 64
    %v1175 = vpop.permute.xlu0 %1174
    %v1177 = vmul.f32 %v1170, %v1175
    %1179 = vrot.lane.b32.xlu0 %v1177, 32
    %v1180 = vpop.permute.xlu0 %1179
    %v1182 = vadd.f32 %v1172, %v1180
    %v1183 = vtanh.pop %v1182
    %1185 = vrot.lane.b32.xlu0 %v1183, 64
    %v1186 = vpop.permute.xlu0 %1185
    %v1188 = vmul.f32 %v1170, %v1186
    %1190 = vrot.lane.b32.xlu0 %v1188, 32
    %v1191 = vpop.permute.xlu0 %1190
    %v1192 = vsel %vm175, %v1191, 0
    %1194 = vmatprep.subr.mxu0 0.0
    %1195 = vmatpush1.msra.mxu0 0.0
    %1196 = vmatprep.subr.mxu0 0.0
    %1197 = vmatpush1.msra.mxu0 0.0
    %1198 = vmatprep.subr.mxu0 0.0
    %1199 = vmatpush1.msra.mxu0 0.0
    %1200 = vmatprep.subr.mxu0 0.0
    %1201 = vmatpush1.msra.mxu0 0.0
    %1202 = vmatprep.subr.mxu0 0.0
    %1203 = vmatpush1.msra.mxu0 0.0
    %1204 = vmatprep.subr.mxu0 0.0
    %1205 = vmatpush1.msra.mxu0 0.0
    %1206 = vmatprep.subr.mxu0 0.0
    %1207 = vmatpush1.msra.mxu0 0.0
    %1208 = vmatprep.subr.mxu0 0.0
    %1209 = vmatpush1.msra.mxu0 0.0
    %1210 = vmatprep.subr.mxu0 0.0
    %1211 = vmatpush1.msra.mxu0 0.0
    %1212 = vmatprep.subr.mxu0 0.0
    %1213 = vmatpush1.msra.mxu0 0.0
    %1214 = vmatprep.subr.mxu0 0.0
    %1215 = vmatpush1.msra.mxu0 0.0
    %1216 = vmatprep.subr.mxu0 0.0
    %1217 = vmatpush1.msra.mxu0 0.0
    %1218 = vmatprep.subr.mxu0 0.0
    %1219 = vmatpush1.msra.mxu0 %v881
    %1220 = vmatprep.subr.mxu0 0.0
    %1221 = vmatpush1.msra.mxu0 %v880
    %1222 = vmatprep.subr.mxu0 0.0
    %1223 = vmatpush1.msra.mxu0 %v879
    %1224 = vmatprep.subr.mxu0 0.0
    %1225 = vmatpush1.msra.mxu0 %v878
    %1226 = vmatprep.subr.mxu0 0.0
    %1227 = vmatpush2.msra.mxu0 0.0
    %1228 = vmatprep.subr.mxu0 0.0
    %1229 = vmatpush2.msra.mxu0 0.0
    %1230 = vmatprep.subr.mxu0 0.0
    %1231 = vmatpush2.msra.mxu0 0.0
    %1232 = vmatprep.subr.mxu0 0.0
    %1233 = vmatpush2.msra.mxu0 0.0
    %1234 = vmatprep.subr.mxu0 0.0
    %1235 = vmatpush2.msra.mxu0 0.0
    %1236 = vmatprep.subr.mxu0 0.0
    %1237 = vmatpush2.msra.mxu0 0.0
    %1238 = vmatprep.subr.mxu0 0.0
    %1239 = vmatpush2.msra.mxu0 0.0
    %1240 = vmatprep.subr.mxu0 0.0
    %1241 = vmatpush2.msra.mxu0 0.0
    %1242 = vmatprep.subr.mxu0 0.0
    %1243 = vmatpush2.msra.mxu0 0.0
    %1244 = vmatprep.subr.mxu0 0.0
    %1245 = vmatpush2.msra.mxu0 0.0
    %1246 = vmatprep.subr.mxu0 0.0
    %1247 = vmatpush2.msra.mxu0 0.0
    %1248 = vmatprep.subr.mxu0 0.0
    %1249 = vmatpush2.msra.mxu0 0.0
    %1250 = vmatprep.subr.mxu0 0.0
    %1251 = vmatpush2.msra.mxu0 0.0
    %1252 = vmatprep.subr.mxu0 0.0
    %1253 = vmatpush2.msra.mxu0 0.0
    %1254 = vmatprep.subr.mxu0 0.0
    %1255 = vmatpush2.msra.mxu0 0.0
    %1256 = vmatprep.subr.mxu0 0.0
    %1257 = vmatpush2.msra.mxu0 0.0
    %1258 = vmatprep.mubr.f32.mxu0 0.0
    %1259 = vmatmul.mubr.f32.gmra.mxu0 %v1192
    %v1260 = vpop.f32.mrf.mxu0
    %v1261 = vadd.f32 0.0, %v1260
    %v1262 = vpop.f32.mrf.mxu0
    %1263 = vdwg.mxu0
    %v1264 = vadd.f32 %v971, %v1261
    %v1265 = vxor.u32 %v1264, 2147483648
    %v1266 = vmul.f32 %v1265, 1.442695
    %v1267 = vpow.pop %v1266
    %v1268 = vadd.f32 %v1267, 1.0
    %v1269 = vrcp.pop %v1268
    %v1270 = vmul.f32 1.0, %v1269
    %v1271 = vtanh.pop %v1264
    %v1272 = vmul.f32 %v1270, %v1182
    %1274 = vrot.lane.b32.xlu0 %v1271, 64
    %v1275 = vpop.permute.xlu0 %1274
    %v1277 = vmul.f32 %v1270, %v1275
    %1279 = vrot.lane.b32.xlu0 %v1277, 32
    %v1280 = vpop.permute.xlu0 %1279
    %v1282 = vadd.f32 %v1272, %v1280
    %v1283 = vtanh.pop %v1282
    %1285 = vrot.lane.b32.xlu0 %v1283, 64
    %v1286 = vpop.permute.xlu0 %1285
    %v1288 = vmul.f32 %v1270, %v1286
    %1290 = vrot.lane.b32.xlu0 %v1288, 32
    %v1291 = vpop.permute.xlu0 %1290
    %v1292 = vsel %vm175, %v1291, 0
    %1294 = vmatprep.subr.mxu0 0.0
    %1295 = vmatpush1.msra.mxu0 0.0
    %1296 = vmatprep.subr.mxu0 0.0
    %1297 = vmatpush1.msra.mxu0 0.0
    %1298 = vmatprep.subr.mxu0 0.0
    %1299 = vmatpush1.msra.mxu0 0.0
    %1300 = vmatprep.subr.mxu0 0.0
    %1301 = vmatpush1.msra.mxu0 0.0
    %1302 = vmatprep.subr.mxu0 0.0
    %1303 = vmatpush1.msra.mxu0 0.0
    %1304 = vmatprep.subr.mxu0 0.0
    %1305 = vmatpush1.msra.mxu0 0.0
    %1306 = vmatprep.subr.mxu0 0.0
    %1307 = vmatpush1.msra.mxu0 0.0
    %1308 = vmatprep.subr.mxu0 0.0
    %1309 = vmatpush1.msra.mxu0 0.0
    %1310 = vmatprep.subr.mxu0 0.0
    %1311 = vmatpush1.msra.mxu0 0.0
    %1312 = vmatprep.subr.mxu0 0.0
    %1313 = vmatpush1.msra.mxu0 0.0
    %1314 = vmatprep.subr.mxu0 0.0
    %1315 = vmatpush1.msra.mxu0 0.0
    %1316 = vmatprep.subr.mxu0 0.0
    %1317 = vmatpush1.msra.mxu0 0.0
    %1318 = vmatprep.subr.mxu0 0.0
    %1319 = vmatpush1.msra.mxu0 %v881
    %1320 = vmatprep.subr.mxu0 0.0
    %1321 = vmatpush1.msra.mxu0 %v880
    %1322 = vmatprep.subr.mxu0 0.0
    %1323 = vmatpush1.msra.mxu0 %v879
    %1324 = vmatprep.subr.mxu0 0.0
    %1325 = vmatpush1.msra.mxu0 %v878
    %1326 = vmatprep.subr.mxu0 0.0
    %1327 = vmatpush2.msra.mxu0 0.0
    %1328 = vmatprep.subr.mxu0 0.0
    %1329 = vmatpush2.msra.mxu0 0.0
    %1330 = vmatprep.subr.mxu0 0.0
    %1331 = vmatpush2.msra.mxu0 0.0
    %1332 = vmatprep.subr.mxu0 0.0
    %1333 = vmatpush2.msra.mxu0 0.0
    %1334 = vmatprep.subr.mxu0 0.0
    %1335 = vmatpush2.msra.mxu0 0.0
    %1336 = vmatprep.subr.mxu0 0.0
    %1337 = vmatpush2.msra.mxu0 0.0
    %1338 = vmatprep.subr.mxu0 0.0
    %1339 = vmatpush2.msra.mxu0 0.0
    %1340 = vmatprep.subr.mxu0 0.0
    %1341 = vmatpush2.msra.mxu0 0.0
    %1342 = vmatprep.subr.mxu0 0.0
    %1343 = vmatpush2.msra.mxu0 0.0
    %1344 = vmatprep.subr.mxu0 0.0
    %1345 = vmatpush2.msra.mxu0 0.0
    %1346 = vmatprep.subr.mxu0 0.0
    %1347 = vmatpush2.msra.mxu0 0.0
    %1348 = vmatprep.subr.mxu0 0.0
    %1349 = vmatpush2.msra.mxu0 0.0
    %1350 = vmatprep.subr.mxu0 0.0
    %1351 = vmatpush2.msra.mxu0 0.0
    %1352 = vmatprep.subr.mxu0 0.0
    %1353 = vmatpush2.msra.mxu0 0.0
    %1354 = vmatprep.subr.mxu0 0.0
    %1355 = vmatpush2.msra.mxu0 0.0
    %1356 = vmatprep.subr.mxu0 0.0
    %1357 = vmatpush2.msra.mxu0 0.0
    %1358 = vmatprep.mubr.f32.mxu0 0.0
    %1359 = vmatmul.mubr.f32.gmra.mxu0 %v1292
    %v1360 = vpop.f32.mrf.mxu0
    %v1361 = vadd.f32 0.0, %v1360
    %v1362 = vpop.f32.mrf.mxu0
    %1363 = vdwg.mxu0
    %v1364 = vadd.f32 %v976, %v1361
    %v1365 = vxor.u32 %v1364, 2147483648
    %v1366 = vmul.f32 %v1365, 1.442695
    %v1367 = vpow.pop %v1366
    %v1368 = vadd.f32 %v1367, 1.0
    %v1369 = vrcp.pop %v1368
    %v1370 = vmul.f32 1.0, %v1369
    %v1371 = vtanh.pop %v1364
    %v1372 = vmul.f32 %v1370, %v1282
    %1374 = vrot.lane.b32.xlu0 %v1371, 64
    %v1375 = vpop.permute.xlu0 %1374
    %v1377 = vmul.f32 %v1370, %v1375
    %1379 = vrot.lane.b32.xlu0 %v1377, 32
    %v1380 = vpop.permute.xlu0 %1379
    %v1382 = vadd.f32 %v1372, %v1380
    %v1383 = vtanh.pop %v1382
    %1385 = vrot.lane.b32.xlu0 %v1383, 64
    %v1386 = vpop.permute.xlu0 %1385
    %v1388 = vmul.f32 %v1370, %v1386
    %1390 = vrot.lane.b32.xlu0 %v1388, 32
    %v1391 = vpop.permute.xlu0 %1390
    %v1392 = vsel %vm175, %v1391, 0
    %1394 = vmatprep.subr.mxu0 0.0
    %1395 = vmatpush1.msra.mxu0 0.0
    %1396 = vmatprep.subr.mxu0 0.0
    %1397 = vmatpush1.msra.mxu0 0.0
    %1398 = vmatprep.subr.mxu0 0.0
    %1399 = vmatpush1.msra.mxu0 0.0
    %1400 = vmatprep.subr.mxu0 0.0
    %1401 = vmatpush1.msra.mxu0 0.0
    %1402 = vmatprep.subr.mxu0 0.0
    %1403 = vmatpush1.msra.mxu0 0.0
    %1404 = vmatprep.subr.mxu0 0.0
    %1405 = vmatpush1.msra.mxu0 0.0
    %1406 = vmatprep.subr.mxu0 0.0
    %1407 = vmatpush1.msra.mxu0 0.0
    %1408 = vmatprep.subr.mxu0 0.0
    %1409 = vmatpush1.msra.mxu0 0.0
    %1410 = vmatprep.subr.mxu0 0.0
    %1411 = vmatpush1.msra.mxu0 0.0
    %1412 = vmatprep.subr.mxu0 0.0
    %1413 = vmatpush1.msra.mxu0 0.0
    %1414 = vmatprep.subr.mxu0 0.0
    %1415 = vmatpush1.msra.mxu0 0.0
    %1416 = vmatprep.subr.mxu0 0.0
    %1417 = vmatpush1.msra.mxu0 0.0
    %1418 = vmatprep.subr.mxu0 0.0
    %1419 = vmatpush1.msra.mxu0 %v881
    %1420 = vmatprep.subr.mxu0 0.0
    %1421 = vmatpush1.msra.mxu0 %v880
    %1422 = vmatprep.subr.mxu0 0.0
    %1423 = vmatpush1.msra.mxu0 %v879
    %1424 = vmatprep.subr.mxu0 0.0
    %1425 = vmatpush1.msra.mxu0 %v878
    %1426 = vmatprep.subr.mxu0 0.0
    %1427 = vmatpush2.msra.mxu0 0.0
    %1428 = vmatprep.subr.mxu0 0.0
    %1429 = vmatpush2.msra.mxu0 0.0
    %1430 = vmatprep.subr.mxu0 0.0
    %1431 = vmatpush2.msra.mxu0 0.0
    %1432 = vmatprep.subr.mxu0 0.0
    %1433 = vmatpush2.msra.mxu0 0.0
    %1434 = vmatprep.subr.mxu0 0.0
    %1435 = vmatpush2.msra.mxu0 0.0
    %1436 = vmatprep.subr.mxu0 0.0
    %1437 = vmatpush2.msra.mxu0 0.0
    %1438 = vmatprep.subr.mxu0 0.0
    %1439 = vmatpush2.msra.mxu0 0.0
    %1440 = vmatprep.subr.mxu0 0.0
    %1441 = vmatpush2.msra.mxu0 0.0
    %1442 = vmatprep.subr.mxu0 0.0
    %1443 = vmatpush2.msra.mxu0 0.0
    %1444 = vmatprep.subr.mxu0 0.0
    %1445 = vmatpush2.msra.mxu0 0.0
    %1446 = vmatprep.subr.mxu0 0.0
    %1447 = vmatpush2.msra.mxu0 0.0
    %1448 = vmatprep.subr.mxu0 0.0
    %1449 = vmatpush2.msra.mxu0 0.0
    %1450 = vmatprep.subr.mxu0 0.0
    %1451 = vmatpush2.msra.mxu0 0.0
    %1452 = vmatprep.subr.mxu0 0.0
    %1453 = vmatpush2.msra.mxu0 0.0
    %1454 = vmatprep.subr.mxu0 0.0
    %1455 = vmatpush2.msra.mxu0 0.0
    %1456 = vmatprep.subr.mxu0 0.0
    %1457 = vmatpush2.msra.mxu0 0.0
    %1458 = vmatprep.mubr.f32.mxu0 0.0
    %1459 = vmatmul.mubr.f32.gmra.mxu0 %v1392
    %v1460 = vpop.f32.mrf.mxu0
    %v1461 = vadd.f32 0.0, %v1460
    %v1462 = vpop.f32.mrf.mxu0
    %1463 = vdwg.mxu0
    %v1464 = vadd.f32 %v981, %v1461
    %v1465 = vxor.u32 %v1464, 2147483648
    %v1466 = vmul.f32 %v1465, 1.442695
    %v1467 = vpow.pop %v1466
    %v1468 = vadd.f32 %v1467, 1.0
    %v1469 = vrcp.pop %v1468
    %v1470 = vmul.f32 1.0, %v1469
    %v1471 = vtanh.pop %v1464
    %v1472 = vmul.f32 %v1470, %v1382
    %1474 = vrot.lane.b32.xlu0 %v1471, 64
    %v1475 = vpop.permute.xlu0 %1474
    %v1477 = vmul.f32 %v1470, %v1475
    %1479 = vrot.lane.b32.xlu0 %v1477, 32
    %v1480 = vpop.permute.xlu0 %1479
    %v1482 = vadd.f32 %v1472, %v1480
    %v1483 = vtanh.pop %v1482
    %1485 = vrot.lane.b32.xlu0 %v1483, 64
    %v1486 = vpop.permute.xlu0 %1485
    %v1488 = vmul.f32 %v1470, %v1486
    %1490 = vrot.lane.b32.xlu0 %v1488, 32
    %v1491 = vpop.permute.xlu0 %1490
    %v1492 = vsel %vm175, %v1491, 0
    %1494 = vmatprep.subr.mxu0 0.0
    %1495 = vmatpush1.msra.mxu0 0.0
    %1496 = vmatprep.subr.mxu0 0.0
    %1497 = vmatpush1.msra.mxu0 0.0
    %1498 = vmatprep.subr.mxu0 0.0
    %1499 = vmatpush1.msra.mxu0 0.0
    %1500 = vmatprep.subr.mxu0 0.0
    %1501 = vmatpush1.msra.mxu0 0.0
    %1502 = vmatprep.subr.mxu0 0.0
    %1503 = vmatpush1.msra.mxu0 0.0
    %1504 = vmatprep.subr.mxu0 0.0
    %1505 = vmatpush1.msra.mxu0 0.0
    %1506 = vmatprep.subr.mxu0 0.0
    %1507 = vmatpush1.msra.mxu0 0.0
    %1508 = vmatprep.subr.mxu0 0.0
    %1509 = vmatpush1.msra.mxu0 0.0
    %1510 = vmatprep.subr.mxu0 0.0
    %1511 = vmatpush1.msra.mxu0 0.0
    %1512 = vmatprep.subr.mxu0 0.0
    %1513 = vmatpush1.msra.mxu0 0.0
    %1514 = vmatprep.subr.mxu0 0.0
    %1515 = vmatpush1.msra.mxu0 0.0
    %1516 = vmatprep.subr.mxu0 0.0
    %1517 = vmatpush1.msra.mxu0 0.0
    %1518 = vmatprep.subr.mxu0 0.0
    %1519 = vmatpush1.msra.mxu0 %v881
    %1520 = vmatprep.subr.mxu0 0.0
    %1521 = vmatpush1.msra.mxu0 %v880
    %1522 = vmatprep.subr.mxu0 0.0
    %1523 = vmatpush1.msra.mxu0 %v879
    %1524 = vmatprep.subr.mxu0 0.0
    %1525 = vmatpush1.msra.mxu0 %v878
    %1526 = vmatprep.subr.mxu0 0.0
    %1527 = vmatpush2.msra.mxu0 0.0
    %1528 = vmatprep.subr.mxu0 0.0
    %1529 = vmatpush2.msra.mxu0 0.0
    %1530 = vmatprep.subr.mxu0 0.0
    %1531 = vmatpush2.msra.mxu0 0.0
    %1532 = vmatprep.subr.mxu0 0.0
    %1533 = vmatpush2.msra.mxu0 0.0
    %1534 = vmatprep.subr.mxu0 0.0
    %1535 = vmatpush2.msra.mxu0 0.0
    %1536 = vmatprep.subr.mxu0 0.0
    %1537 = vmatpush2.msra.mxu0 0.0
    %1538 = vmatprep.subr.mxu0 0.0
    %1539 = vmatpush2.msra.mxu0 0.0
    %1540 = vmatprep.subr.mxu0 0.0
    %1541 = vmatpush2.msra.mxu0 0.0
    %1542 = vmatprep.subr.mxu0 0.0
    %1543 = vmatpush2.msra.mxu0 0.0
    %1544 = vmatprep.subr.mxu0 0.0
    %1545 = vmatpush2.msra.mxu0 0.0
    %1546 = vmatprep.subr.mxu0 0.0
    %1547 = vmatpush2.msra.mxu0 0.0
    %1548 = vmatprep.subr.mxu0 0.0
    %1549 = vmatpush2.msra.mxu0 0.0
    %1550 = vmatprep.subr.mxu0 0.0
    %1551 = vmatpush2.msra.mxu0 0.0
    %1552 = vmatprep.subr.mxu0 0.0
    %1553 = vmatpush2.msra.mxu0 0.0
    %1554 = vmatprep.subr.mxu0 0.0
    %1555 = vmatpush2.msra.mxu0 0.0
    %1556 = vmatprep.subr.mxu0 0.0
    %1557 = vmatpush2.msra.mxu0 0.0
    %1558 = vmatprep.mubr.f32.mxu0 0.0
    %1559 = vmatmul.mubr.f32.gmra.mxu0 %v1492
    %v1560 = vpop.f32.mrf.mxu0
    %v1561 = vadd.f32 0.0, %v1560
    %v1562 = vpop.f32.mrf.mxu0
    %1563 = vdwg.mxu0
    %v1564 = vadd.f32 %v986, %v1561
    %v1565 = vxor.u32 %v1564, 2147483648
    %v1566 = vmul.f32 %v1565, 1.442695
    %v1567 = vpow.pop %v1566
    %v1568 = vadd.f32 %v1567, 1.0
    %v1569 = vrcp.pop %v1568
    %v1570 = vmul.f32 1.0, %v1569
    %v1571 = vtanh.pop %v1564
    %v1572 = vmul.f32 %v1570, %v1482
    %1574 = vrot.lane.b32.xlu0 %v1571, 64
    %v1575 = vpop.permute.xlu0 %1574
    %v1577 = vmul.f32 %v1570, %v1575
    %1579 = vrot.lane.b32.xlu0 %v1577, 32
    %v1580 = vpop.permute.xlu0 %1579
    %v1582 = vadd.f32 %v1572, %v1580
    %v1583 = vtanh.pop %v1582
    %1585 = vrot.lane.b32.xlu0 %v1583, 64
    %v1586 = vpop.permute.xlu0 %1585
    %v1588 = vmul.f32 %v1570, %v1586
    %1590 = vrot.lane.b32.xlu0 %v1588, 32
    %v1591 = vpop.permute.xlu0 %1590
    %v1592 = vsel %vm175, %v1591, 0
    %1594 = vmatprep.subr.mxu0 0.0
    %1595 = vmatpush1.msra.mxu0 0.0
    %1596 = vmatprep.subr.mxu0 0.0
    %1597 = vmatpush1.msra.mxu0 0.0
    %1598 = vmatprep.subr.mxu0 0.0
    %1599 = vmatpush1.msra.mxu0 0.0
    %1600 = vmatprep.subr.mxu0 0.0
    %1601 = vmatpush1.msra.mxu0 0.0
    %1602 = vmatprep.subr.mxu0 0.0
    %1603 = vmatpush1.msra.mxu0 0.0
    %1604 = vmatprep.subr.mxu0 0.0
    %1605 = vmatpush1.msra.mxu0 0.0
    %1606 = vmatprep.subr.mxu0 0.0
    %1607 = vmatpush1.msra.mxu0 0.0
    %1608 = vmatprep.subr.mxu0 0.0
    %1609 = vmatpush1.msra.mxu0 0.0
    %1610 = vmatprep.subr.mxu0 0.0
    %1611 = vmatpush1.msra.mxu0 0.0
    %1612 = vmatprep.subr.mxu0 0.0
    %1613 = vmatpush1.msra.mxu0 0.0
    %1614 = vmatprep.subr.mxu0 0.0
    %1615 = vmatpush1.msra.mxu0 0.0
    %1616 = vmatprep.subr.mxu0 0.0
    %1617 = vmatpush1.msra.mxu0 0.0
    %1618 = vmatprep.subr.mxu0 0.0
    %1619 = vmatpush1.msra.mxu0 %v881
    %1620 = vmatprep.subr.mxu0 0.0
    %1621 = vmatpush1.msra.mxu0 %v880
    %1622 = vmatprep.subr.mxu0 0.0
    %1623 = vmatpush1.msra.mxu0 %v879
    %1624 = vmatprep.subr.mxu0 0.0
    %1625 = vmatpush1.msra.mxu0 %v878
    %1626 = vmatprep.subr.mxu0 0.0
    %1627 = vmatpush2.msra.mxu0 0.0
    %1628 = vmatprep.subr.mxu0 0.0
    %1629 = vmatpush2.msra.mxu0 0.0
    %1630 = vmatprep.subr.mxu0 0.0
    %1631 = vmatpush2.msra.mxu0 0.0
    %1632 = vmatprep.subr.mxu0 0.0
    %1633 = vmatpush2.msra.mxu0 0.0
    %1634 = vmatprep.subr.mxu0 0.0
    %1635 = vmatpush2.msra.mxu0 0.0
    %1636 = vmatprep.subr.mxu0 0.0
    %1637 = vmatpush2.msra.mxu0 0.0
    %1638 = vmatprep.subr.mxu0 0.0
    %1639 = vmatpush2.msra.mxu0 0.0
    %1640 = vmatprep.subr.mxu0 0.0
    %1641 = vmatpush2.msra.mxu0 0.0
    %1642 = vmatprep.subr.mxu0 0.0
    %1643 = vmatpush2.msra.mxu0 0.0
    %1644 = vmatprep.subr.mxu0 0.0
    %1645 = vmatpush2.msra.mxu0 0.0
    %1646 = vmatprep.subr.mxu0 0.0
    %1647 = vmatpush2.msra.mxu0 0.0
    %1648 = vmatprep.subr.mxu0 0.0
    %1649 = vmatpush2.msra.mxu0 0.0
    %1650 = vmatprep.subr.mxu0 0.0
    %1651 = vmatpush2.msra.mxu0 0.0
    %1652 = vmatprep.subr.mxu0 0.0
    %1653 = vmatpush2.msra.mxu0 0.0
    %1654 = vmatprep.subr.mxu0 0.0
    %1655 = vmatpush2.msra.mxu0 0.0
    %1656 = vmatprep.subr.mxu0 0.0
    %1657 = vmatpush2.msra.mxu0 0.0
    %1658 = vmatprep.mubr.f32.mxu0 0.0
    %1659 = vmatmul.mubr.f32.gmra.mxu0 %v1592
    %v1660 = vpop.f32.mrf.mxu0
    %v1661 = vadd.f32 0.0, %v1660
    %v1662 = vpop.f32.mrf.mxu0
    %1663 = vdwg.mxu0
    %v1664 = vadd.f32 %v991, %v1661
    %v1665 = vxor.u32 %v1664, 2147483648
    %v1666 = vmul.f32 %v1665, 1.442695
    %v1667 = vpow.pop %v1666
    %v1668 = vadd.f32 %v1667, 1.0
    %v1669 = vrcp.pop %v1668
    %v1670 = vmul.f32 1.0, %v1669
    %v1671 = vtanh.pop %v1664
    %v1672 = vmul.f32 %v1670, %v1582
    %1674 = vrot.lane.b32.xlu0 %v1671, 64
    %v1675 = vpop.permute.xlu0 %1674
    %v1677 = vmul.f32 %v1670, %v1675
    %1679 = vrot.lane.b32.xlu0 %v1677, 32
    %v1680 = vpop.permute.xlu0 %1679
    %v1682 = vadd.f32 %v1672, %v1680
    %v1683 = vtanh.pop %v1682
    %1685 = vrot.lane.b32.xlu0 %v1683, 64
    %v1686 = vpop.permute.xlu0 %1685
    %v1688 = vmul.f32 %v1670, %v1686
    %1690 = vrot.lane.b32.xlu0 %v1188, 64
    %v1691 = vpop.permute.xlu0 %1690
    %1693 = vrot.lane.b32.xlu0 %v1288, 96
    %v1694 = vpop.permute.xlu0 %1693
    %1697 = vrot.lane.b32.xlu0 %v1588, 64
    %v1698 = vpop.permute.xlu0 %1697
    %1701 = vrot.lane.b32.xlu0 %v1688, 96
    %v1702 = vpop.permute.xlu0 %1701
    %v1704 = vsel %vm175, %v1091, %v1691
    %vm1705 = vcmask 523264
    %v1706 = vsel %vm1705, %v1704, %v1694
    %vm1707 = vcmask 785408
    %v1708 = vsel %vm1707, %v1706, %v1388
    %v1709 = vsel %vm175, %v1491, %v1698
    %v1710 = vsel %vm1705, %v1709, %v1702
    %v1711 = vld [vmem:[%s7] sm:$0xff]
    %v1712 = vld [vmem:[%s7 + $0x8] sm:$0xff]
    %v1713 = vld [vmem:[%s7 + $0x10] sm:$0xff]
    %v1714 = vld [vmem:[%s7 + $0x18] sm:$0xff]
    %v1715 = vld [vmem:[%s7 + $0x20] sm:$0xff]
    %v1716 = vld [vmem:[%s7 + $0x28] sm:$0xff]
    %v1717 = vld [vmem:[%s7 + $0x30] sm:$0xff]
    %v1718 = vld [vmem:[%s7 + $0x38] sm:$0xff]
    %v1719 = vld [vmem:[%s7 + $0x40] sm:$0xff]
    %v1720 = vld [vmem:[%s7 + $0x48] sm:$0xff]
    %v1721 = vld [vmem:[%s7 + $0x50] sm:$0xff]
    %v1722 = vld [vmem:[%s7 + $0x58] sm:$0xff]
    %v1723 = vld [vmem:[%s7 + $0x60] sm:$0xff]
    %v1724 = vld [vmem:[%s7 + $0x68] sm:$0xff]
    %v1725 = vld [vmem:[%s7 + $0x70] sm:$0xff]
    %v1726 = vld [vmem:[%s7 + $0x78] sm:$0xff]
    %v1727 = vld [vmem:[%s7 + $0x80] sm:$0xff]
    %v1728 = vld [vmem:[%s7 + $0x88] sm:$0xff]
    %v1729 = vld [vmem:[%s7 + $0x90] sm:$0xff]
    %v1730 = vld [vmem:[%s7 + $0x98] sm:$0xff]
    %v1731 = vld [vmem:[%s7 + $0xa0] sm:$0xff]
    %v1732 = vld [vmem:[%s7 + $0xa8] sm:$0xff]
    %v1733 = vld [vmem:[%s7 + $0xb0] sm:$0xff]
    %v1734 = vld [vmem:[%s7 + $0xb8] sm:$0xff]
    %v1735 = vld [vmem:[%s7 + $0xc0] sm:$0xff]
    %v1736 = vld [vmem:[%s7 + $0xc8] sm:$0xff]
    %v1737 = vld [vmem:[%s7 + $0xd0] sm:$0xff]
    %v1738 = vld [vmem:[%s7 + $0xd8] sm:$0xff]
    %v1739 = vld [vmem:[%s8] sm:$0x1]
    %v1741 = vlaneseq
    %v1742 = vshrl.u32 %v1741, 7
    %v1743 = vsub.s32 0, %v1742
    %v1744 = vrot.slane %v1739, %v1743
    %v1747 = vsel %vm1707, %v1710, 0
    %1749 = vmatprep.subr.mxu0 0.0
    %1750 = vmatpush1.msra.mxu0 %v1726
    %1751 = vmatprep.subr.mxu0 0.0
    %1752 = vmatpush1.msra.mxu0 %v1725
    %1753 = vmatprep.subr.mxu0 0.0
    %1754 = vmatpush1.msra.mxu0 %v1724
    %1755 = vmatprep.subr.mxu0 0.0
    %1756 = vmatpush1.msra.mxu0 %v1723
    %1757 = vmatprep.subr.mxu0 0.0
    %1758 = vmatpush1.msra.mxu0 %v1722
    %1759 = vmatprep.subr.mxu0 0.0
    %1760 = vmatpush1.msra.mxu0 %v1721
    %1761 = vmatprep.subr.mxu0 0.0
    %1762 = vmatpush1.msra.mxu0 %v1720
    %1763 = vmatprep.subr.mxu0 0.0
    %1764 = vmatpush1.msra.mxu0 %v1719
    %1765 = vmatprep.subr.mxu0 0.0
    %1766 = vmatpush1.msra.mxu0 %v1718
    %1767 = vmatprep.subr.mxu0 0.0
    %1768 = vmatpush1.msra.mxu0 %v1717
    %1769 = vmatprep.subr.mxu0 0.0
    %1770 = vmatpush1.msra.mxu0 %v1716
    %1771 = vmatprep.subr.mxu0 0.0
    %1772 = vmatpush1.msra.mxu0 %v1715
    %1773 = vmatprep.subr.mxu0 0.0
    %1774 = vmatpush1.msra.mxu0 %v1714
    %1775 = vmatprep.subr.mxu0 0.0
    %1776 = vmatpush1.msra.mxu0 %v1713
    %1777 = vmatprep.subr.mxu0 0.0
    %1778 = vmatpush1.msra.mxu0 %v1712
    %1779 = vmatprep.subr.mxu0 0.0
    %1780 = vmatpush1.msra.mxu0 %v1711
    %1781 = vmatprep.subr.mxu0 0.0
    %1782 = vmatpush2.msra.mxu0 0.0
    %1783 = vmatprep.subr.mxu0 0.0
    %1784 = vmatpush2.msra.mxu0 0.0
    %1785 = vmatprep.subr.mxu0 0.0
    %1786 = vmatpush2.msra.mxu0 0.0
    %1787 = vmatprep.subr.mxu0 0.0
    %1788 = vmatpush2.msra.mxu0 0.0
    %1789 = vmatprep.subr.mxu0 0.0
    %1790 = vmatpush2.msra.mxu0 %v1738
    %1791 = vmatprep.subr.mxu0 0.0
    %1792 = vmatpush2.msra.mxu0 %v1737
    %1793 = vmatprep.subr.mxu0 0.0
    %1794 = vmatpush2.msra.mxu0 %v1736
    %1795 = vmatprep.subr.mxu0 0.0
    %1796 = vmatpush2.msra.mxu0 %v1735
    %1797 = vmatprep.subr.mxu0 0.0
    %1798 = vmatpush2.msra.mxu0 %v1734
    %1799 = vmatprep.subr.mxu0 0.0
    %1800 = vmatpush2.msra.mxu0 %v1733
    %1801 = vmatprep.subr.mxu0 0.0
    %1802 = vmatpush2.msra.mxu0 %v1732
    %1803 = vmatprep.subr.mxu0 0.0
    %1804 = vmatpush2.msra.mxu0 %v1731
    %1805 = vmatprep.subr.mxu0 0.0
    %1806 = vmatpush2.msra.mxu0 %v1730
    %1807 = vmatprep.subr.mxu0 0.0
    %1808 = vmatpush2.msra.mxu0 %v1729
    %1809 = vmatprep.subr.mxu0 0.0
    %1810 = vmatpush2.msra.mxu0 %v1728
    %1811 = vmatprep.subr.mxu0 0.0
    %1812 = vmatpush2.msra.mxu0 %v1727
    %1813 = vmatprep.mubr.f32.mxu0 %v1747
    %1814 = vmatmul.mubr.f32.gmra.mxu0 %v1708
    %v1815 = vpop.f32.mrf.mxu0
    %v1816 = vadd.f32 %v1744, %v1815
    %v1817 = vpop.f32.mrf.mxu0
    %1818 = vdwg.mxu0
    %vm1819 = vcmask 39936
    %1820 = vst.msk [vmem:[#allocation2] sm:$0xff] %vm1819, %v1816
    // Predicated region
    $region38: #{tpu_custom_call.1} parent=1 // pred_check
      _
    $region39: #{tpu_custom_call.1} parent=1 // pred_check_branch
      %1822 = sbr.rel (0) target = $region41
    $region40: #{tpu_custom_call.1} parent=1 // pred_region
      %s1824 = ssub.s32 128, 128
      %1825 = vsyncadd [#allocation3], %s1824
      %s1827 = sshll.u32 [#allocation2], 4
      %s1828 = int_to_ptr.vmem [resolvable:$true] %s1827
      %1830 = dma.vmem_to_hbm [thread:$0]  %s1828, 128, %s9, [#allocation3]
    $region41: #{tpu_custom_call.1} parent=1 // pred_fallthru
      _
    // Predicated region
    $region42: #{tpu_custom_call.1} parent=1 // pred_check
      _
    $region43: #{tpu_custom_call.1} parent=1 // pred_check_branch
      %1832 = sbr.rel (0) target = $region45
    $region44: #{tpu_custom_call.1} parent=1 // pred_region
      %1833 = dma.done [#allocation3], 128
    $region45: #{tpu_custom_call.1} parent=1 // pred_fallthru
      _
    %1834 = vsyncpa [#allocation3], 1

</llo_original>
